<compile_context>
chip_gen: v6e
topology: v6e:2x2x1
jax: 0.10.0
libtpu: 0.0.40
codegen_flags: <defaults>
</compile_context>

<pallas_src>
import math

import jax
import jax.numpy as jnp
import numpy as np
from jax.experimental import pallas as pl
from jax.experimental.pallas import tpu as pltpu


def round_up(x, m):
    return (x + m - 1) // m * m


# ----------------------------------------------------------------------------
# Pallas kernel: one time-chunk of Tc steps per grid invocation.
# ----------------------------------------------------------------------------
def make_gru_kernel(Tc, B_pad, H_pad):
    def gru_kernel(x_ref,      # (Tc*B_pad, I)        time-major rows: row = t*B_pad + b
                   w_ih_ref,   # (I, 3*H_pad)         gate-major columns [r | z | n]
                   w_hh_ref,   # (H_pad, 3*H_pad)
                   b_x_ref,    # (1, 3*H_pad)         [b_ir+b_hr, b_iz+b_hz, b_in] (padded)
                   b_hn_ref,   # (1, H_pad)
                   out_ref,    # (Tc*B_pad, H_pad)
                   xp_ref,     # VMEM scratch (Tc*B_pad, 3*H_pad)
                   h_ref):     # VMEM scratch (B_pad, H_pad) -- carried across chunks
        # ---- Zero the hidden state on the first time-chunk (torch h0 = 0) ----
        @pl.when(pl.program_id(0) == 0)
        def _():
            h_ref[...] = jnp.zeros_like(h_ref)

        # ---- Phase 1: hoisted input projection for this chunk (one wide MXU matmul) ----
        xp_ref[...] = (
            jnp.dot(x_ref[...], w_ih_ref[...],
                    preferred_element_type=jnp.float32)
            + b_x_ref[...]
        )

        # Hoist loop-invariant loads / broadcasts out of the serial loop
        # (JAX does not CSE broadcast_in_dim inside an unrolled loop).
        w_hh = w_hh_ref[...]
        b_hn = jnp.broadcast_to(b_hn_ref[...], (B_pad, H_pad))

        # ---- Phase 2: serial recurrence over the Tc steps of this chunk ----
        def step(t, h):
            row = pl.multiple_of(t * B_pad, B_pad)
            xpt = xp_ref[pl.ds(row, B_pad), :]                           # (B_pad, 3H_pad)
            hp = jnp.dot(h, w_hh, preferred_element_type=jnp.float32)    # (B_pad, 3H_pad)

            # r / z gates: one sigmoid on the concatenated, tile-aligned (B, 2H_pad) slab.
            rz = jax.nn.sigmoid(xpt[:, :2 * H_pad] + hp[:, :2 * H_pad])
            r = rz[:, :H_pad]
            z = rz[:, H_pad:]
            # n gate: b_hn must stay inside the r*(.) term (PyTorch GRU).
            n = jnp.tanh(xpt[:, 2 * H_pad:] + r * (hp[:, 2 * H_pad:] + b_hn))

            h_new = (1.0 - z) * n + z * h
            out_ref[pl.ds(row, B_pad), :] = h_new                        # unmasked vst
            return h_new

        h0 = h_ref[...]
        h_final = jax.lax.fori_loop(0, Tc, step, h0, unroll=min(Tc, 8))
        h_ref[...] = h_final   # carry hidden state to the next chunk

    return gru_kernel


def gru_forward_pallas(x_flat, fused, *, T_pad, B_pad, Tc):
    """x_flat: (T_pad*B_pad, I) f32, time-major flattened.  Returns (T_pad*B_pad, H_pad)."""
    TB, I = x_flat.shape
    H_pad = fused["H_pad"]
    assert TB == T_pad * B_pad and T_pad % Tc == 0
    num_chunks = T_pad // Tc

    kernel = make_gru_kernel(Tc, B_pad, H_pad)

    # Explicit VMEM budget (the narrow x block pads to 128 lanes in VMEM).
    i_lanes = round_up(I, 128)
    x_blk = Tc * B_pad * i_lanes * 4
    out_blk = Tc * B_pad * H_pad * 4
    xp_scr = Tc * B_pad * 3 * H_pad * 4
    h_scr = B_pad * H_pad * 4
    w_bytes = (round_up(I, 8) * 3 * H_pad + H_pad * 3 * H_pad + 4 * H_pad) * 4
    needed = 2 * (x_blk + out_blk) + xp_scr + h_scr + 2 * w_bytes + (2 << 20)
    vmem_limit = int(min(max(needed, 32 << 20), 48 << 20))   # fits v7x's 64 MiB

    return pl.pallas_call(
        kernel,
        out_shape=jax.ShapeDtypeStruct((T_pad * B_pad, H_pad), jnp.float32),
        grid_spec=pltpu.PrefetchScalarGridSpec(
            num_scalar_prefetch=0,
            grid=(num_chunks,),
            in_specs=[
                pl.BlockSpec((Tc * B_pad, I), lambda c: (c, 0)),        # x chunk
                pl.BlockSpec((I, 3 * H_pad), lambda c: (0, 0)),         # W_ih fused
                pl.BlockSpec((H_pad, 3 * H_pad), lambda c: (0, 0)),     # W_hh fused
                pl.BlockSpec((1, 3 * H_pad), lambda c: (0, 0)),         # fused input bias
                pl.BlockSpec((1, H_pad), lambda c: (0, 0)),             # b_hn
            ],
            out_specs=pl.BlockSpec((Tc * B_pad, H_pad), lambda c: (c, 0)),
            scratch_shapes=[
                pltpu.VMEM((Tc * B_pad, 3 * H_pad), jnp.float32),       # xp (per chunk)
                pltpu.VMEM((B_pad, H_pad), jnp.float32),                # h carry
            ],
        ),
        compiler_params=pltpu.CompilerParams(
            dimension_semantics=("arbitrary",),     # h carry => sequential grid axis
            vmem_limit_bytes=vmem_limit,
        ),
    )(x_flat, fused["w_ih"], fused["w_hh"], fused["b_x"], fused["b_hn"])


# ----------------------------------------------------------------------------
# Parameter init (torch.nn.GRU shapes / scale) + lane-aligned fused packing.
# ----------------------------------------------------------------------------
def init_gru_raw(key, input_size, hidden_size):
    H = hidden_size
    k = 1.0 / math.sqrt(H)
    keys = jax.random.split(key, 4)
    return {
        "w_ih": jax.random.uniform(keys[0], (3 * H, input_size), jnp.float32, -k, k),
        "w_hh": jax.random.uniform(keys[1], (3 * H, H), jnp.float32, -k, k),
        "b_ih": jax.random.uniform(keys[2], (3 * H,), jnp.float32, -k, k),
        "b_hh": jax.random.uniform(keys[3], (3 * H,), jnp.float32, -k, k),
    }


def pack_gru_params(raw, hidden_size):
    """Gate-major, 128-lane-aligned packing: each gate occupies its own H_pad slab.

    Zero-padding is exact: padded input lanes of h stay 0 forever because
    sigmoid(0)=0.5, tanh(0)=0 -> h_pad_new = 0.5*0 + 0.5*h_pad = 0.
    """
    H = hidden_size
    H_pad = round_up(H, 128)
    I = raw["w_ih"].shape[1]

    w_ih_g = raw["w_ih"].reshape(3, H, I)     # gate order [r, z, n]
    w_hh_g = raw["w_hh"].reshape(3, H, H)
    b_ih_g = raw["b_ih"].reshape(3, H)
    b_hh_g = raw["b_hh"].reshape(3, H)

    w_ih_p = jnp.zeros((I, 3, H_pad), jnp.float32)
    w_ih_p = w_ih_p.at[:, :, :H].set(jnp.transpose(w_ih_g, (2, 0, 1)))
    w_ih_p = w_ih_p.reshape(I, 3 * H_pad)

    w_hh_p = jnp.zeros((H_pad, 3, H_pad), jnp.float32)
    w_hh_p = w_hh_p.at[:H, :, :H].set(jnp.transpose(w_hh_g, (2, 0, 1)))
    w_hh_p = w_hh_p.reshape(H_pad, 3 * H_pad)

    # b_x = [b_ir+b_hr, b_iz+b_hz, b_in]; b_hn stays separate (inside r*(.)).
    b_x = jnp.zeros((3, H_pad), jnp.float32)
    b_x = b_x.at[0, :H].set(b_ih_g[0] + b_hh_g[0])
    b_x = b_x.at[1, :H].set(b_ih_g[1] + b_hh_g[1])
    b_x = b_x.at[2, :H].set(b_ih_g[2])
    b_x = b_x.reshape(1, 3 * H_pad)

    b_hn = jnp.zeros((1, H_pad), jnp.float32).at[0, :H].set(b_hh_g[2])

    return {"w_ih": w_ih_p, "w_hh": w_hh_p, "b_x": b_x, "b_hn": b_hn,
            "H": H, "H_pad": H_pad}


# ----------------------------------------------------------------------------
# RecurrentEncoder wrapper (length-gather glue in plain JAX, like PyTorch).
# ----------------------------------------------------------------------------
def recurrent_encoder_forward(mdp, lengths, fused, *, chunk_t=32):
    """
    mdp:     (B, T, input_size) float32   (PyTorch batch_first layout)
    lengths: static Python list of ints, lengths[i] <= T
    returns: (sum(lengths), hidden_size)  -- matches the is_batch=True GRU path
    """
    mdp = jnp.asarray(mdp, jnp.float32)
    B, T, I = mdp.shape
    H, H_pad = fused["H"], fused["H_pad"]

    B_pad = round_up(B, 8)             # full f32 sublanes -> unmasked stores
    Tc = min(chunk_t, T)               # time-chunk size (inner serial trip count)
    T_pad = round_up(T, Tc)

    # Time-major flattened, zero-padded input (row = t*B_pad + b) for the kernel.
    x_tm = jnp.transpose(mdp, (1, 0, 2))                              # (T, B, I)
    x_tm = jnp.pad(x_tm, ((0, T_pad - T), (0, B_pad - B), (0, 0)))
    x_flat = x_tm.reshape(T_pad * B_pad, I)

    out_flat = gru_forward_pallas(x_flat, fused, T_pad=T_pad, B_pad=B_pad, Tc=Tc)
    out_tm = out_flat.reshape(T_pad, B_pad, H_pad)[:T, :B, :H]        # drop padding

    # concat_i( out[i, :lengths[i], :] )  == concat_i( out_tm[:lengths[i], i, :] )
    pieces = [out_tm[:int(l), i, :] for i, l in enumerate(lengths)]
    output = jnp.concatenate(pieces, axis=0)                          # (sum(lengths), H)
    return jnp.squeeze(output)   # mirrors torch .squeeze()


# Pure-JAX reference (per-gate math on raw torch-style params) to verify the
# recurrence, the fused-bias algebra, and the lane/sublane padding.
def gru_forward_ref(x_tmajor, raw):
    H = raw["w_hh"].shape[1]
    wir, wiz, win = raw["w_ih"][:H].T, raw["w_ih"][H:2 * H].T, raw["w_ih"][2 * H:].T
    whr, whz, whn = raw["w_hh"][:H].T, raw["w_hh"][H:2 * H].T, raw["w_hh"][2 * H:].T
    bir, biz, bin_ = raw["b_ih"][:H], raw["b_ih"][H:2 * H], raw["b_ih"][2 * H:]
    bhr, bhz, bhn = raw["b_hh"][:H], raw["b_hh"][H:2 * H], raw["b_hh"][2 * H:]

    def step(h, x):
        r = jax.nn.sigmoid(x @ wir + bir + h @ whr + bhr)
        z = jax.nn.sigmoid(x @ wiz + biz + h @ whz + bhz)
        n = jnp.tanh(x @ win + bin_ + r * (h @ whn + bhn))
        h_new = (1.0 - z) * n + z * h
        return h_new, h_new

    B = x_tmajor.shape[1]
    h0 = jnp.zeros((B, H), jnp.float32)
    _, outs = jax.lax.scan(step, h0, x_tmajor)
    return outs


if __name__ == "__main__":
    # Small shapes consistent with the module's forward.
    B, T, INPUT_SIZE, HIDDEN = 2, 8, 4, 32
    lengths = [5, 8]                                   # static, like the torch list

    key = jax.random.PRNGKey(0)
    k_param, k_data = jax.random.split(key)
    raw = init_gru_raw(k_param, INPUT_SIZE, HIDDEN)
    fused = pack_gru_params(raw, HIDDEN)
    mdp = jax.random.normal(k_data, (B, T, INPUT_SIZE), jnp.float32)

    # chunk_t=4 -> 2 time-chunks, exercising the cross-chunk hidden-state carry.
    out = recurrent_encoder_forward(mdp, lengths, fused, chunk_t=4)
    out = jax.block_until_ready(out)
    assert out.shape == (sum(lengths), HIDDEN), out.shape

    # Numerical check against the pure-JAX GRU reference (raw, unfused params).
    ref_tm = gru_forward_ref(jnp.transpose(mdp, (1, 0, 2)), raw)   # (T, B, H)
    ref_out = jnp.concatenate([ref_tm[:l, i, :] for i, l in enumerate(lengths)],
                              axis=0)
    np.testing.assert_allclose(np.asarray(out), np.asarray(ref_out),
                               rtol=1e-5, atol=1e-5)

    print("KERNEL_OK")
</pallas_src>

<mosaic_0001>
module attributes {stable_mosaic.version = 11 : i64} {
  func.func @gru_kernel(%arg0: i32, %arg1: memref<32x4xf32, #tpu.memory_space<vmem>>, %arg2: memref<4x384xf32, #tpu.memory_space<vmem>>, %arg3: memref<128x384xf32, #tpu.memory_space<vmem>>, %arg4: memref<1x384xf32, #tpu.memory_space<vmem>>, %arg5: memref<1x128xf32, #tpu.memory_space<vmem>>, %arg6: memref<32x128xf32, #tpu.memory_space<vmem>>, %arg7: memref<32x384xf32, #tpu.memory_space<vmem>>, %arg8: memref<8x128xf32, #tpu.memory_space<vmem>>) attributes {dimension_semantics = [#tpu.dimension_semantics<arbitrary>], iteration_bounds = array<i64: 2>, scalar_prefetch = 0 : i64, scratch_operands = 2 : i64, tpu.core_type = #tpu.core_type<tc>, window_params = [{transform_indices = @transform_0, window_bounds = array<i64: 32, 4>}, {pipeline_mode = #tpu.pipeline_mode<synchronous>, transform_indices = @transform_1, window_bounds = array<i64: 4, 384>}, {pipeline_mode = #tpu.pipeline_mode<synchronous>, transform_indices = @transform_2, window_bounds = array<i64: 128, 384>}, {pipeline_mode = #tpu.pipeline_mode<synchronous>, transform_indices = @transform_3, window_bounds = array<i64: 1, 384>}, {pipeline_mode = #tpu.pipeline_mode<synchronous>, transform_indices = @transform_4, window_bounds = array<i64: 1, 128>}, {transform_indices = @transform_5, window_bounds = array<i64: 32, 128>}]} {
    %c0_i32 = arith.constant 0 : i32
    %0 = arith.cmpi eq, %arg0, %c0_i32 : i32
    %1 = arith.extui %0 : i1 to i32
    %c0_i32_0 = arith.constant 0 : i32
    %2 = arith.cmpi ne, %1, %c0_i32_0 : i32
    scf.if %2 {
      %cst_40 = arith.constant 0.000000e+00 : f32
      %128 = vector.broadcast %cst_40 : f32 to vector<8x128xf32>
      %c0_41 = arith.constant 0 : index
      %c0_42 = arith.constant 0 : index
      %129 = vector.load %arg8[%c0_41, %c0_42] : memref<8x128xf32, #tpu.memory_space<vmem>>, vector<8x128xf32>
      tpu.vector_store %arg8[%c0_41, %c0_42], %128 {strides = array<i32>} : memref<8x128xf32, #tpu.memory_space<vmem>>, vector<8x128xf32>,
    } else {
    }
    %c0 = arith.constant 0 : index
    %c0_1 = arith.constant 0 : index
    %3 = vector.load %arg1[%c0, %c0_1] : memref<32x4xf32, #tpu.memory_space<vmem>>, vector<32x4xf32>
    %c0_2 = arith.constant 0 : index
    %c0_3 = arith.constant 0 : index
    %4 = vector.load %arg2[%c0_2, %c0_3] : memref<4x384xf32, #tpu.memory_space<vmem>>, vector<4x384xf32>
    %cst = arith.constant dense<0.000000e+00> : vector<32x384xf32>
    %5 = tpu.matmul %3, %4, %cst {dimension_numbers = #tpu.dot_dimension_numbers<[1], [0], [0], [1], [0, 0, 1, 1], [], []>} : vector<32x4xf32>, vector<4x384xf32>, vector<32x384xf32> -> vector<32x384xf32>
    %c0_4 = arith.constant 0 : index
    %c0_5 = arith.constant 0 : index
    %6 = vector.load %arg4[%c0_4, %c0_5] : memref<1x384xf32, #tpu.memory_space<vmem>>, vector<1x384xf32>
    %7 = vector.broadcast %6 : vector<1x384xf32> to vector<32x384xf32>
    %8 = arith.addf %5, %7 : vector<32x384xf32>
    %c0_6 = arith.constant 0 : index
    %c0_7 = arith.constant 0 : index
    %9 = vector.load %arg7[%c0_6, %c0_7] : memref<32x384xf32, #tpu.memory_space<vmem>>, vector<32x384xf32>
    tpu.vector_store %arg7[%c0_6, %c0_7], %8 {strides = array<i32>} : memref<32x384xf32, #tpu.memory_space<vmem>>, vector<32x384xf32>,
    %c0_8 = arith.constant 0 : index
    %c0_9 = arith.constant 0 : index
    %10 = vector.load %arg3[%c0_8, %c0_9] : memref<128x384xf32, #tpu.memory_space<vmem>>, vector<128x384xf32>
    %c0_10 = arith.constant 0 : index
    %c0_11 = arith.constant 0 : index
    %11 = vector.load %arg5[%c0_10, %c0_11] : memref<1x128xf32, #tpu.memory_space<vmem>>, vector<1x128xf32>
    %12 = vector.shape_cast %11 : vector<1x128xf32> to vector<1x128xf32>
    %13 = vector.broadcast %12 : vector<1x128xf32> to vector<8x128xf32>
    %c0_12 = arith.constant 0 : index
    %c0_13 = arith.constant 0 : index
    %14 = vector.load %arg8[%c0_12, %c0_13] : memref<8x128xf32, #tpu.memory_space<vmem>>, vector<8x128xf32>
    %c0_i32_14 = arith.constant 0 : i32
    %c8_i32 = arith.constant 8 : i32
    %15 = arith.muli %c0_i32_14, %c8_i32 : i32
    %16 = tpu.assume_multiple %15, 8 : i32
    %17 = arith.index_cast %16 : i32 to index
    %c0_15 = arith.constant 0 : index
    %18 = vector.load %arg7[%17, %c0_15] : memref<32x384xf32, #tpu.memory_space<vmem>>, vector<8x384xf32>
    %cst_16 = arith.constant dense<0.000000e+00> : vector<8x384xf32>
    %19 = tpu.matmul %14, %10, %cst_16 {dimension_numbers = #tpu.dot_dimension_numbers<[1], [0], [0], [1], [0, 0, 1, 1], [], []>} : vector<8x128xf32>, vector<128x384xf32>, vector<8x384xf32> -> vector<8x384xf32>
    %20 = vector.extract_strided_slice %18 {offsets = [0, 0], sizes = [8, 256], strides = [1, 1]} : vector<8x384xf32> to vector<8x256xf32>
    %21 = vector.extract_strided_slice %19 {offsets = [0, 0], sizes = [8, 256], strides = [1, 1]} : vector<8x384xf32> to vector<8x256xf32>
    %22 = arith.addf %20, %21 : vector<8x256xf32>
    %23 = arith.negf %22 : vector<8x256xf32>
    %24 = math.exp %23 : vector<8x256xf32>
    %cst_17 = arith.constant 1.000000e+00 : f32
    %25 = vector.broadcast %cst_17 : f32 to vector<8x256xf32>
    %26 = arith.addf %25, %24 : vector<8x256xf32>
    %27 = arith.divf %25, %26 : vector<8x256xf32>
    %28 = vector.extract_strided_slice %27 {offsets = [0, 0], sizes = [8, 128], strides = [1, 1]} : vector<8x256xf32> to vector<8x128xf32>
    %29 = vector.extract_strided_slice %27 {offsets = [0, 128], sizes = [8, 128], strides = [1, 1]} : vector<8x256xf32> to vector<8x128xf32>
    %30 = vector.extract_strided_slice %18 {offsets = [0, 256], sizes = [8, 128], strides = [1, 1]} : vector<8x384xf32> to vector<8x128xf32>
    %31 = vector.extract_strided_slice %19 {offsets = [0, 256], sizes = [8, 128], strides = [1, 1]} : vector<8x384xf32> to vector<8x128xf32>
    %32 = arith.addf %31, %13 : vector<8x128xf32>
    %33 = arith.mulf %28, %32 : vector<8x128xf32>
    %34 = arith.addf %30, %33 : vector<8x128xf32>
    %35 = math.tanh %34 : vector<8x128xf32>
    %cst_18 = arith.constant 1.000000e+00 : f32
    %36 = vector.broadcast %cst_18 : f32 to vector<8x128xf32>
    %37 = arith.subf %36, %29 : vector<8x128xf32>
    %38 = arith.mulf %37, %35 : vector<8x128xf32>
    %39 = arith.mulf %29, %14 : vector<8x128xf32>
    %40 = arith.addf %38, %39 : vector<8x128xf32>
    %41 = arith.index_cast %16 : i32 to index
    %c0_19 = arith.constant 0 : index
    %42 = vector.load %arg6[%41, %c0_19] : memref<32x128xf32, #tpu.memory_space<vmem>>, vector<8x128xf32>
    tpu.vector_store %arg6[%41, %c0_19], %40 {strides = array<i32>} : memref<32x128xf32, #tpu.memory_space<vmem>>, vector<8x128xf32>,
    %c1_i32 = arith.constant 1 : i32
    %c8_i32_20 = arith.constant 8 : i32
    %43 = arith.muli %c1_i32, %c8_i32_20 : i32
    %44 = tpu.assume_multiple %43, 8 : i32
    %45 = arith.index_cast %44 : i32 to index
    %c0_21 = arith.constant 0 : index
    %46 = vector.load %arg7[%45, %c0_21] : memref<32x384xf32, #tpu.memory_space<vmem>>, vector<8x384xf32>
    %cst_22 = arith.constant dense<0.000000e+00> : vector<8x384xf32>
    %47 = tpu.matmul %40, %10, %cst_22 {dimension_numbers = #tpu.dot_dimension_numbers<[1], [0], [0], [1], [0, 0, 1, 1], [], []>} : vector<8x128xf32>, vector<128x384xf32>, vector<8x384xf32> -> vector<8x384xf32>
    %48 = vector.extract_strided_slice %46 {offsets = [0, 0], sizes = [8, 256], strides = [1, 1]} : vector<8x384xf32> to vector<8x256xf32>
    %49 = vector.extract_strided_slice %47 {offsets = [0, 0], sizes = [8, 256], strides = [1, 1]} : vector<8x384xf32> to vector<8x256xf32>
    %50 = arith.addf %48, %49 : vector<8x256xf32>
    %51 = arith.negf %50 : vector<8x256xf32>
    %52 = math.exp %51 : vector<8x256xf32>
    %cst_23 = arith.constant 1.000000e+00 : f32
    %53 = vector.broadcast %cst_23 : f32 to vector<8x256xf32>
    %54 = arith.addf %53, %52 : vector<8x256xf32>
    %55 = arith.divf %53, %54 : vector<8x256xf32>
    %56 = vector.extract_strided_slice %55 {offsets = [0, 0], sizes = [8, 128], strides = [1, 1]} : vector<8x256xf32> to vector<8x128xf32>
    %57 = vector.extract_strided_slice %55 {offsets = [0, 128], sizes = [8, 128], strides = [1, 1]} : vector<8x256xf32> to vector<8x128xf32>
    %58 = vector.extract_strided_slice %46 {offsets = [0, 256], sizes = [8, 128], strides = [1, 1]} : vector<8x384xf32> to vector<8x128xf32>
    %59 = vector.extract_strided_slice %47 {offsets = [0, 256], sizes = [8, 128], strides = [1, 1]} : vector<8x384xf32> to vector<8x128xf32>
    %60 = arith.addf %59, %13 : vector<8x128xf32>
    %61 = arith.mulf %56, %60 : vector<8x128xf32>
    %62 = arith.addf %58, %61 : vector<8x128xf32>
    %63 = math.tanh %62 : vector<8x128xf32>
    %cst_24 = arith.constant 1.000000e+00 : f32
    %64 = vector.broadcast %cst_24 : f32 to vector<8x128xf32>
    %65 = arith.subf %64, %57 : vector<8x128xf32>
    %66 = arith.mulf %65, %63 : vector<8x128xf32>
    %67 = arith.mulf %57, %40 : vector<8x128xf32>
    %68 = arith.addf %66, %67 : vector<8x128xf32>
    %69 = arith.index_cast %44 : i32 to index
    %c0_25 = arith.constant 0 : index
    %70 = vector.load %arg6[%69, %c0_25] : memref<32x128xf32, #tpu.memory_space<vmem>>, vector<8x128xf32>
    tpu.vector_store %arg6[%69, %c0_25], %68 {strides = array<i32>} : memref<32x128xf32, #tpu.memory_space<vmem>>, vector<8x128xf32>,
    %c2_i32 = arith.constant 2 : i32
    %c8_i32_26 = arith.constant 8 : i32
    %71 = arith.muli %c2_i32, %c8_i32_26 : i32
    %72 = tpu.assume_multiple %71, 8 : i32
    %73 = arith.index_cast %72 : i32 to index
    %c0_27 = arith.constant 0 : index
    %74 = vector.load %arg7[%73, %c0_27] : memref<32x384xf32, #tpu.memory_space<vmem>>, vector<8x384xf32>
    %cst_28 = arith.constant dense<0.000000e+00> : vector<8x384xf32>
    %75 = tpu.matmul %68, %10, %cst_28 {dimension_numbers = #tpu.dot_dimension_numbers<[1], [0], [0], [1], [0, 0, 1, 1], [], []>} : vector<8x128xf32>, vector<128x384xf32>, vector<8x384xf32> -> vector<8x384xf32>
    %76 = vector.extract_strided_slice %74 {offsets = [0, 0], sizes = [8, 256], strides = [1, 1]} : vector<8x384xf32> to vector<8x256xf32>
    %77 = vector.extract_strided_slice %75 {offsets = [0, 0], sizes = [8, 256], strides = [1, 1]} : vector<8x384xf32> to vector<8x256xf32>
    %78 = arith.addf %76, %77 : vector<8x256xf32>
    %79 = arith.negf %78 : vector<8x256xf32>
    %80 = math.exp %79 : vector<8x256xf32>
    %cst_29 = arith.constant 1.000000e+00 : f32
    %81 = vector.broadcast %cst_29 : f32 to vector<8x256xf32>
    %82 = arith.addf %81, %80 : vector<8x256xf32>
    %83 = arith.divf %81, %82 : vector<8x256xf32>
    %84 = vector.extract_strided_slice %83 {offsets = [0, 0], sizes = [8, 128], strides = [1, 1]} : vector<8x256xf32> to vector<8x128xf32>
    %85 = vector.extract_strided_slice %83 {offsets = [0, 128], sizes = [8, 128], strides = [1, 1]} : vector<8x256xf32> to vector<8x128xf32>
    %86 = vector.extract_strided_slice %74 {offsets = [0, 256], sizes = [8, 128], strides = [1, 1]} : vector<8x384xf32> to vector<8x128xf32>
    %87 = vector.extract_strided_slice %75 {offsets = [0, 256], sizes = [8, 128], strides = [1, 1]} : vector<8x384xf32> to vector<8x128xf32>
    %88 = arith.addf %87, %13 : vector<8x128xf32>
    %89 = arith.mulf %84, %88 : vector<8x128xf32>
    %90 = arith.addf %86, %89 : vector<8x128xf32>
    %91 = math.tanh %90 : vector<8x128xf32>
    %cst_30 = arith.constant 1.000000e+00 : f32
    %92 = vector.broadcast %cst_30 : f32 to vector<8x128xf32>
    %93 = arith.subf %92, %85 : vector<8x128xf32>
    %94 = arith.mulf %93, %91 : vector<8x128xf32>
    %95 = arith.mulf %85, %68 : vector<8x128xf32>
    %96 = arith.addf %94, %95 : vector<8x128xf32>
    %97 = arith.index_cast %72 : i32 to index
    %c0_31 = arith.constant 0 : index
    %98 = vector.load %arg6[%97, %c0_31] : memref<32x128xf32, #tpu.memory_space<vmem>>, vector<8x128xf32>
    tpu.vector_store %arg6[%97, %c0_31], %96 {strides = array<i32>} : memref<32x128xf32, #tpu.memory_space<vmem>>, vector<8x128xf32>,
    %c3_i32 = arith.constant 3 : i32
    %c8_i32_32 = arith.constant 8 : i32
    %99 = arith.muli %c3_i32, %c8_i32_32 : i32
    %100 = tpu.assume_multiple %99, 8 : i32
    %101 = arith.index_cast %100 : i32 to index
    %c0_33 = arith.constant 0 : index
    %102 = vector.load %arg7[%101, %c0_33] : memref<32x384xf32, #tpu.memory_space<vmem>>, vector<8x384xf32>
    %cst_34 = arith.constant dense<0.000000e+00> : vector<8x384xf32>
    %103 = tpu.matmul %96, %10, %cst_34 {dimension_numbers = #tpu.dot_dimension_numbers<[1], [0], [0], [1], [0, 0, 1, 1], [], []>} : vector<8x128xf32>, vector<128x384xf32>, vector<8x384xf32> -> vector<8x384xf32>
    %104 = vector.extract_strided_slice %102 {offsets = [0, 0], sizes = [8, 256], strides = [1, 1]} : vector<8x384xf32> to vector<8x256xf32>
    %105 = vector.extract_strided_slice %103 {offsets = [0, 0], sizes = [8, 256], strides = [1, 1]} : vector<8x384xf32> to vector<8x256xf32>
    %106 = arith.addf %104, %105 : vector<8x256xf32>
    %107 = arith.negf %106 : vector<8x256xf32>
    %108 = math.exp %107 : vector<8x256xf32>
    %cst_35 = arith.constant 1.000000e+00 : f32
    %109 = vector.broadcast %cst_35 : f32 to vector<8x256xf32>
    %110 = arith.addf %109, %108 : vector<8x256xf32>
    %111 = arith.divf %109, %110 : vector<8x256xf32>
    %112 = vector.extract_strided_slice %111 {offsets = [0, 0], sizes = [8, 128], strides = [1, 1]} : vector<8x256xf32> to vector<8x128xf32>
    %113 = vector.extract_strided_slice %111 {offsets = [0, 128], sizes = [8, 128], strides = [1, 1]} : vector<8x256xf32> to vector<8x128xf32>
    %114 = vector.extract_strided_slice %102 {offsets = [0, 256], sizes = [8, 128], strides = [1, 1]} : vector<8x384xf32> to vector<8x128xf32>
    %115 = vector.extract_strided_slice %103 {offsets = [0, 256], sizes = [8, 128], strides = [1, 1]} : vector<8x384xf32> to vector<8x128xf32>
    %116 = arith.addf %115, %13 : vector<8x128xf32>
    %117 = arith.mulf %112, %116 : vector<8x128xf32>
    %118 = arith.addf %114, %117 : vector<8x128xf32>
    %119 = math.tanh %118 : vector<8x128xf32>
    %cst_36 = arith.constant 1.000000e+00 : f32
    %120 = vector.broadcast %cst_36 : f32 to vector<8x128xf32>
    %121 = arith.subf %120, %113 : vector<8x128xf32>
    %122 = arith.mulf %121, %119 : vector<8x128xf32>
    %123 = arith.mulf %113, %96 : vector<8x128xf32>
    %124 = arith.addf %122, %123 : vector<8x128xf32>
    %125 = arith.index_cast %100 : i32 to index
    %c0_37 = arith.constant 0 : index
    %126 = vector.load %arg6[%125, %c0_37] : memref<32x128xf32, #tpu.memory_space<vmem>>, vector<8x128xf32>
    tpu.vector_store %arg6[%125, %c0_37], %124 {strides = array<i32>} : memref<32x128xf32, #tpu.memory_space<vmem>>, vector<8x128xf32>,
    %c4_i32 = arith.constant 4 : i32
    %c0_38 = arith.constant 0 : index
    %c0_39 = arith.constant 0 : index
    %127 = vector.load %arg8[%c0_38, %c0_39] : memref<8x128xf32, #tpu.memory_space<vmem>>, vector<8x128xf32>
    tpu.vector_store %arg8[%c0_38, %c0_39], %124 {strides = array<i32>} : memref<8x128xf32, #tpu.memory_space<vmem>>, vector<8x128xf32>,
    return
  }
  func.func @transform_0(%arg0: i32) -> (i32, i32) {
    %c0_i32 = arith.constant 0 : i32
    %c0_i32_0 = arith.constant 0 : i32
    return %arg0, %c0_i32 : i32, i32
  }
  func.func @transform_1(%arg0: i32) -> (i32, i32) {
    %c0_i32 = arith.constant 0 : i32
    %c0_i32_0 = arith.constant 0 : i32
    %c0_i32_1 = arith.constant 0 : i32
    return %c0_i32, %c0_i32_0 : i32, i32
  }
  func.func @transform_2(%arg0: i32) -> (i32, i32) {
    %c0_i32 = arith.constant 0 : i32
    %c0_i32_0 = arith.constant 0 : i32
    %c0_i32_1 = arith.constant 0 : i32
    return %c0_i32, %c0_i32_0 : i32, i32
  }
  func.func @transform_3(%arg0: i32) -> (i32, i32) {
    %c0_i32 = arith.constant 0 : i32
    %c0_i32_0 = arith.constant 0 : i32
    %c0_i32_1 = arith.constant 0 : i32
    return %c0_i32, %c0_i32_0 : i32, i32
  }
  func.func @transform_4(%arg0: i32) -> (i32, i32) {
    %c0_i32 = arith.constant 0 : i32
    %c0_i32_0 = arith.constant 0 : i32
    %c0_i32_1 = arith.constant 0 : i32
    return %c0_i32, %c0_i32_0 : i32, i32
  }
  func.func @transform_5(%arg0: i32) -> (i32, i32) {
    %c0_i32 = arith.constant 0 : i32
    %c0_i32_0 = arith.constant 0 : i32
    return %arg0, %c0_i32 : i32, i32
  }
}

</mosaic_0001>

<llo_original>
// kernel: tpu_custom_call.1
$region0: #{tpu_custom_call.1}
  #allocation0 [shape = 'u32[]', space=smem, size = 0x4, offset = 0x4, fixed_abs, tag = 'smem constant byte address 0x4 - core index']
  #allocation1 [shape = 'u32[144,128]{1,0:T(1,128)}', space=vmem, size = 0x12000, scoped, tag = 'internal scratch']
  #allocation2 [shape = 'f32[32,384]{1,0:T(8,128)}', space=vmem, size = 0xc000, scoped, tag = 'scratch operand']
  #allocation3 [shape = 'f32[8,128]{1,0:T(8,128)}', space=vmem, size = 0x1000, scoped, tag = 'scratch operand']
  %s0 = inlined_call_operand.vmem [shape: f32[64,4], index: 0, kind: input, shape index: {}]
  %s1 = inlined_call_operand.vmem [shape: f32[4,384], index: 1, kind: input, shape index: {}]
  %s2 = inlined_call_operand.hbm [shape: f32[128,384], index: 2, kind: input, shape index: {}]
  %s3 = inlined_call_operand.vmem [shape: f32[1,384], index: 3, kind: input, shape index: {}]
  %s4 = inlined_call_operand.vmem [shape: f32[1,128], index: 4, kind: input, shape index: {}]
  %s5 = inlined_call_operand.hbm [shape: f32[64,128], index: 5, kind: output, shape index: {}]
  %s6 = sld [smem:[#allocation0]]
  $region61: #{tpu_custom_call.1} parent=0
    _
  %s8 = ssub.s32 1, %s6
  %s9 = scalar_select 0, %s8, %s6
  $region1: #{tpu_custom_call.1} parent=0
    #allocation4 [shape = 'u8[196608]{0}', space=vmem, size = 0x30000, scoped, tag = 'input window, operand 2, single buffered']
    #allocation5 [shape = 's32[2]{0}', space=sflag, size = 0x8, scoped, tag = 'scoped memory for tpu_custom_call.1']
    #allocation6 [shape = 's32[2]{0}', space=sflag, size = 0x8, scoped, tag = 'scoped memory for tpu_custom_call.1']
    #allocation7 [shape = 'u8[32768]{0}', space=vmem, size = 0x8000, scoped, tag = 'output window, operand 0']
    %10 = vsyncpa [#allocation5], 0
    %11 = vsyncpa [#allocation6], 0
    %s12 = scalar_lea.sflag [#allocation6], 1
    %13 = vsyncpa %s12, 0
    loop: start=0, step=1, limit=4
    $region2: #{tpu_custom_call.1} parent=1 // loop_pre_header
      _
    $region3: #{tpu_custom_call.1} parent=1 // loop_header
      %s15 = sphi 0, %s19
      %p16 = scmp.ge.s32.totalorder %s15, 4
      %s25 = sphi 0, %s27
      %s28 = sphi 0, %s25
      %s29 = sphi 0, %s28
      %s45 = sphi 0, %s29
      %s49 = sphi 0, %s49
      %s51 = sphi 0, %s49
      %s52 = sphi 0, %s51
      %s66 = sphi 0, %s52
      %s70 = sphi 0, %s70
      %s72 = sphi 0, %s70
      %s73 = sphi 0, %s72
      %s87 = sphi 0, %s73
      %s91 = sphi 0, %s91
      %s93 = sphi 0, %s91
      %s94 = sphi 0, %s93
      %s108 = sphi 0, %s94
      %s112 = sphi 0, %s112
      %s114 = sphi 0, %s112
      %s115 = sphi 0, %s114
      %s129 = sphi 0, %s115
      %s135 = sphi 0, %s137
      %s138 = sphi 0, %s135
      %s139 = sphi 0, %s138
      %s155 = sphi 0, %s139
    $region4: #{tpu_custom_call.1} parent=1 // loop_header_branch
      %18 = sbr.rel (%p16) target = $region8
    $region5: #{tpu_custom_call.1} parent=1 // loop_body
      %s20 = ssub.s32 %s15, 1
      %s21 = ssub.s32 %s15, 2
      %s22 = sadd.s32 %s15, 1
      %s23 = ssub.s32 %s15, %s22
      %p24 = scmp.eq.s32.totalorder %s23, 0
      %s26 = sadd.s32 %s25, 1
      %s27 = scalar_select %p24, %s25, %s26
      %p30 = pneg %p24
      %p31 = scmp.eq.s32.totalorder %s15, 1
      %p32 = por %p30, %p31
      %p33 = scmp.ne.s32.totalorder %s25, %s28
      %p34 = scmp.eq.s32.totalorder %s15, 0
      %p35 = por %p33, %p34
      %p36 = scmp.ne.s32.totalorder %s25, %s28
      %p37 = scmp.eq.s32.totalorder %s20, 1
      %p38 = por %p36, %p37
      %p39 = scmp.ne.s32.totalorder %s28, %s29
      %p40 = scmp.eq.s32.totalorder %s20, 0
      %p41 = por %p39, %p40
      %p42 = scmp.ne.s32.totalorder %s28, %s29
      %p43 = scmp.eq.s32.totalorder %s21, 1
      %p44 = por %p42, %p43
      %p46 = scmp.ne.s32.totalorder %s29, %s45
      %p47 = scmp.eq.s32.totalorder %s21, 0
      %p48 = por %p46, %p47
      %s50 = sadd.s32 %s49, 1
      %p53 = scmp.eq.s32.totalorder %s15, 1
      %p54 = scmp.ne.s32.totalorder %s49, %s51
      %p55 = scmp.eq.s32.totalorder %s15, 0
      %p56 = por %p54, %p55
      %p57 = scmp.ne.s32.totalorder %s49, %s51
      %p58 = scmp.eq.s32.totalorder %s20, 1
      %p59 = por %p57, %p58
      %p60 = scmp.ne.s32.totalorder %s51, %s52
      %p61 = scmp.eq.s32.totalorder %s20, 0
      %p62 = por %p60, %p61
      %p63 = scmp.ne.s32.totalorder %s51, %s52
      %p64 = scmp.eq.s32.totalorder %s21, 1
      %p65 = por %p63, %p64
      %p67 = scmp.ne.s32.totalorder %s52, %s66
      %p68 = scmp.eq.s32.totalorder %s21, 0
      %p69 = por %p67, %p68
      %s71 = sadd.s32 %s70, 1
      %p74 = scmp.eq.s32.totalorder %s15, 1
      %p75 = scmp.ne.s32.totalorder %s70, %s72
      %p76 = scmp.eq.s32.totalorder %s15, 0
      %p77 = por %p75, %p76
      %p78 = scmp.ne.s32.totalorder %s70, %s72
      %p79 = scmp.eq.s32.totalorder %s20, 1
      %p80 = por %p78, %p79
      %p81 = scmp.ne.s32.totalorder %s72, %s73
      %p82 = scmp.eq.s32.totalorder %s20, 0
      %p83 = por %p81, %p82
      %p84 = scmp.ne.s32.totalorder %s72, %s73
      %p85 = scmp.eq.s32.totalorder %s21, 1
      %p86 = por %p84, %p85
      %p88 = scmp.ne.s32.totalorder %s73, %s87
      %p89 = scmp.eq.s32.totalorder %s21, 0
      %p90 = por %p88, %p89
      %s92 = sadd.s32 %s91, 1
      %p95 = scmp.eq.s32.totalorder %s15, 1
      %p96 = scmp.ne.s32.totalorder %s91, %s93
      %p97 = scmp.eq.s32.totalorder %s15, 0
      %p98 = por %p96, %p97
      %p99 = scmp.ne.s32.totalorder %s91, %s93
      %p100 = scmp.eq.s32.totalorder %s20, 1
      %p101 = por %p99, %p100
      %p102 = scmp.ne.s32.totalorder %s93, %s94
      %p103 = scmp.eq.s32.totalorder %s20, 0
      %p104 = por %p102, %p103
      %p105 = scmp.ne.s32.totalorder %s93, %s94
      %p106 = scmp.eq.s32.totalorder %s21, 1
      %p107 = por %p105, %p106
      %p109 = scmp.ne.s32.totalorder %s94, %s108
      %p110 = scmp.eq.s32.totalorder %s21, 0
      %p111 = por %p109, %p110
      %s113 = sadd.s32 %s112, 1
      %p116 = scmp.eq.s32.totalorder %s15, 1
      %p117 = scmp.ne.s32.totalorder %s112, %s114
      %p118 = scmp.eq.s32.totalorder %s15, 0
      %p119 = por %p117, %p118
      %p120 = scmp.ne.s32.totalorder %s112, %s114
      %p121 = scmp.eq.s32.totalorder %s20, 1
      %p122 = por %p120, %p121
      %p123 = scmp.ne.s32.totalorder %s114, %s115
      %p124 = scmp.eq.s32.totalorder %s20, 0
      %p125 = por %p123, %p124
      %p126 = scmp.ne.s32.totalorder %s114, %s115
      %p127 = scmp.eq.s32.totalorder %s21, 1
      %p128 = por %p126, %p127
      %p130 = scmp.ne.s32.totalorder %s115, %s129
      %p131 = scmp.eq.s32.totalorder %s21, 0
      %p132 = por %p130, %p131
      %s133 = ssub.s32 %s15, %s22
      %p134 = scmp.eq.s32.totalorder %s133, 0
      %s136 = sadd.s32 %s135, 1
      %s137 = scalar_select %p134, %s135, %s136
      %p140 = pneg %p134
      %p141 = scmp.eq.s32.totalorder %s15, 1
      %p142 = por %p140, %p141
      %p143 = scmp.ne.s32.totalorder %s135, %s138
      %p144 = scmp.eq.s32.totalorder %s15, 0
      %p145 = por %p143, %p144
      %p146 = scmp.ne.s32.totalorder %s135, %s138
      %p147 = scmp.eq.s32.totalorder %s20, 1
      %p148 = por %p146, %p147
      %p149 = scmp.ne.s32.totalorder %s138, %s139
      %p150 = scmp.eq.s32.totalorder %s20, 0
      %p151 = por %p149, %p150
      %p152 = scmp.ne.s32.totalorder %s138, %s139
      %p153 = scmp.eq.s32.totalorder %s21, 1
      %p154 = por %p152, %p153
      %p156 = scmp.ne.s32.totalorder %s139, %s155
      %p157 = scmp.eq.s32.totalorder %s21, 0
      %p158 = por %p156, %p157
      %p159 = scmp.le.s32.totalorder 1, %s15
      %p160 = scmp.lt.s32.totalorder %s15, 3
      %p161 = pnand %p159, %p160
      %p162 = pneg %p161
      // Predicated region
      $region9: #{tpu_custom_call.1} parent=5 // pred_check
        _
      $region10: #{tpu_custom_call.1} parent=5 // pred_check_branch
        %164 = sbr.rel (%p161) target = $region12
      $region11: #{tpu_custom_call.1} parent=5 // pred_region
        %s165 = ssub.s32 %s15, 1
        // Predicated region
        $region13: #{tpu_custom_call.1} parent=11 // pred_check
          %p166 = pneg %p62
        $region14: #{tpu_custom_call.1} parent=11 // pred_check_branch
          %168 = sbr.rel (%p166) target = $region16
        $region15: #{tpu_custom_call.1} parent=11 // pred_region
          _
        $region16: #{tpu_custom_call.1} parent=11 // pred_fallthru
          _
        // Predicated region
        $region17: #{tpu_custom_call.1} parent=11 // pred_check
          %p169 = pneg %p83
        $region18: #{tpu_custom_call.1} parent=11 // pred_check_branch
          %171 = sbr.rel (%p169) target = $region20
        $region19: #{tpu_custom_call.1} parent=11 // pred_region
          %s173 = ssub.s32 6144, 6144
          %174 = vsyncadd [#allocation5], %s173
          %s175 = sshll.u32 [#allocation4], 4
          %s176 = int_to_ptr.vmem [resolvable:$true] %s175
          %181 = dma.hbm_to_vmem [thread:$0]  %s2, 6144, %s176, [#allocation5], 384, 384, 24
        $region20: #{tpu_custom_call.1} parent=11 // pred_fallthru
          _
        // Predicated region
        $region21: #{tpu_custom_call.1} parent=11 // pred_check
          %p182 = pneg %p104
        $region22: #{tpu_custom_call.1} parent=11 // pred_check_branch
          %184 = sbr.rel (%p182) target = $region24
        $region23: #{tpu_custom_call.1} parent=11 // pred_region
          _
        $region24: #{tpu_custom_call.1} parent=11 // pred_fallthru
          _
        // Predicated region
        $region25: #{tpu_custom_call.1} parent=11 // pred_check
          %p185 = pneg %p125
        $region26: #{tpu_custom_call.1} parent=11 // pred_check_branch
          %187 = sbr.rel (%p185) target = $region28
        $region27: #{tpu_custom_call.1} parent=11 // pred_region
          _
        $region28: #{tpu_custom_call.1} parent=11 // pred_fallthru
          _
      $region12: #{tpu_custom_call.1} parent=5 // pred_fallthru
        _
      %p188 = scmp.lt.s32.totalorder %s15, 2
      // Predicated region
      $region29: #{tpu_custom_call.1} parent=5 // pred_check
        %p189 = pneg %p188
      $region30: #{tpu_custom_call.1} parent=5 // pred_check_branch
        %191 = sbr.rel (%p189) target = $region32
      $region31: #{tpu_custom_call.1} parent=5 // pred_region
        // Predicated region
        $region33: #{tpu_custom_call.1} parent=31 // pred_check
          %p192 = pneg %p35
        $region34: #{tpu_custom_call.1} parent=31 // pred_check_branch
          %194 = sbr.rel (%p192) target = $region36
        $region35: #{tpu_custom_call.1} parent=31 // pred_region
          %s195 = smul.u32 4, %s15
          %p196 = scmp.lt.s32.totalorder %s195, 7
          %s197 = scalar_select %p196, %s195, 7
          %s198 = smul.addr %s197, 8
          %s199 = scalar_lea.vmem %s0, %s198
          %s200 = smul.u32 4, %s15
        $region36: #{tpu_custom_call.1} parent=31 // pred_fallthru
          _
      $region32: #{tpu_custom_call.1} parent=5 // pred_fallthru
        _
      %p201 = scmp.le.s32.totalorder 1, %s15
      %p202 = scmp.lt.s32.totalorder %s15, 3
      %p203 = pnand %p201, %p202
      %p204 = pneg %p203
      // Predicated region
      $region37: #{tpu_custom_call.1} parent=5 // pred_check
        _
      $region38: #{tpu_custom_call.1} parent=5 // pred_check_branch
        %206 = sbr.rel (%p203) target = $region40
      $region39: #{tpu_custom_call.1} parent=5 // pred_region
        %s207 = ssub.s32 %s15, 1
        // Predicated region
        $region41: #{tpu_custom_call.1} parent=39 // pred_check
          %p208 = pneg %p83
        $region42: #{tpu_custom_call.1} parent=39 // pred_check_branch
          %210 = sbr.rel (%p208) target = $region44
        $region43: #{tpu_custom_call.1} parent=39 // pred_region
          %211 = dma.done [#allocation5], 6144
        $region44: #{tpu_custom_call.1} parent=39 // pred_fallthru
          _
        %s212 = smul.u32 4, %s20
        %p213 = scmp.lt.s32.totalorder %s212, 7
        %s214 = scalar_select %p213, %s212, 7
        %s215 = smul.addr %s214, 8
        %s216 = scalar_lea.vmem %s0, %s215
        %p217 = pneg %p41
        %p218 = pneg %p38
        %p219 = pneg %p62
        %p220 = pneg %p59
        %p221 = pneg %p83
        %p222 = pneg %p80
        %p223 = pneg %p104
        %p224 = pneg %p101
        %p225 = pneg %p125
        %p226 = pneg %p122
        %p227 = pneg %p151
        %p228 = pneg %p148
        %s229 = sand.u32 %s138, 1
        %s230 = scalar_lea.sflag [#allocation6], %s229
        %s231 = sand.u32 %s138, 1
        %s232 = smul.addr %s231, 32
        %s233 = scalar_lea.vmem [#allocation7], %s232
        %s234 = smul.u32 4, %s20
        %p235 = scmp.lt.s32.totalorder %s234, 7
        %s236 = scalar_select %p235, %s234, 7
        %s237 = smul.addr %s236, 8
        %s238 = scalar_lea.vmem %s0, %s237
        %s239 = smul.u32 4, %s20
        %s240 = smul.u32 4, %s20
        %p241 = scmp.eq.s32.totalorder %s20, 0
        // Predicated region
        $region45: #{tpu_custom_call.1} parent=39 // pred_check
          %p242 = pneg %p241
        $region46: #{tpu_custom_call.1} parent=39 // pred_check_branch
          %244 = sbr.rel (%p242) target = $region48
        $region47: #{tpu_custom_call.1} parent=39 // pred_region
          %245 = vst [vmem:[#allocation3] sm:$0xff] 0.0
        $region48: #{tpu_custom_call.1} parent=39 // pred_fallthru
          _
        %v246 = vld [vmem:[%s238] sm:$0xff]
        %v247 = vld [vmem:[%s238 + $0x8] sm:$0xff]
        %v248 = vld [vmem:[%s238 + $0x10] sm:$0xff]
        %v249 = vld [vmem:[%s238 + $0x18] sm:$0xff]
        %v250 = vld [vmem:[%s1] sm:$0xff]
        %v251 = vld [vmem:[%s1 + $0x8] sm:$0xf]
        %v252 = vld [vmem:[%s3] sm:$0x7]
        %v254 = vlaneseq
        %v255 = vshrl.u32 %v254, 7
        %v256 = vsub.s32 0, %v255
        %v257 = vrot.slane %v252, %v256
        %v258 = vlaneseq
        %v259 = vshrl.u32 %v258, 7
        %v260 = vsub.s32 1, %v259
        %v261 = vrot.slane %v252, %v260
        %v262 = vlaneseq
        %v263 = vshrl.u32 %v262, 7
        %v264 = vsub.s32 2, %v263
        %v265 = vrot.slane %v252, %v264
        %v271 = vcombine.high %v250, %v250
        %vm272 = vcmask 31744
        %v274 = vsel %vm272, %v246, 0
        %v277 = vsel %vm272, %v247, 0
        %v280 = vsel %vm272, %v248, 0
        %v283 = vsel %vm272, %v249, 0
        %vm285 = vcmask 1043456
        %v286 = vsel %vm285, %v250, 0
        %v288 = vsel %vm285, %v271, 0
        %v290 = vsel %vm285, %v251, 0
        %292 = vmatprep.subr.mxu0 0.0
        %293 = vmatpush1.msra.mxu0 0.0
        %294 = vmatprep.subr.mxu0 0.0
        %295 = vmatpush1.msra.mxu0 0.0
        %296 = vmatprep.subr.mxu0 0.0
        %297 = vmatpush1.msra.mxu0 0.0
        %298 = vmatprep.subr.mxu0 0.0
        %299 = vmatpush1.msra.mxu0 0.0
        %300 = vmatprep.subr.mxu0 0.0
        %301 = vmatpush1.msra.mxu0 0.0
        %302 = vmatprep.subr.mxu0 0.0
        %303 = vmatpush1.msra.mxu0 0.0
        %304 = vmatprep.subr.mxu0 0.0
        %305 = vmatpush1.msra.mxu0 0.0
        %306 = vmatprep.subr.mxu0 0.0
        %307 = vmatpush1.msra.mxu0 0.0
        %308 = vmatprep.subr.mxu0 0.0
        %309 = vmatpush1.msra.mxu0 0.0
        %310 = vmatprep.subr.mxu0 0.0
        %311 = vmatpush1.msra.mxu0 0.0
        %312 = vmatprep.subr.mxu0 0.0
        %313 = vmatpush1.msra.mxu0 0.0
        %314 = vmatprep.subr.mxu0 0.0
        %315 = vmatpush1.msra.mxu0 0.0
        %316 = vmatprep.subr.mxu0 0.0
        %317 = vmatpush1.msra.mxu0 0.0
        %318 = vmatprep.subr.mxu0 0.0
        %319 = vmatpush1.msra.mxu0 0.0
        %320 = vmatprep.subr.mxu0 0.0
        %321 = vmatpush1.msra.mxu0 0.0
        %322 = vmatprep.subr.mxu0 %v288
        %323 = vmatpush1.msra.mxu0 %v286
        %324 = vmatprep.subr.mxu0 0.0
        %325 = vmatpush2.msra.mxu0 0.0
        %326 = vmatprep.subr.mxu0 0.0
        %327 = vmatpush2.msra.mxu0 0.0
        %328 = vmatprep.subr.mxu0 0.0
        %329 = vmatpush2.msra.mxu0 0.0
        %330 = vmatprep.subr.mxu0 0.0
        %331 = vmatpush2.msra.mxu0 0.0
        %332 = vmatprep.subr.mxu0 0.0
        %333 = vmatpush2.msra.mxu0 0.0
        %334 = vmatprep.subr.mxu0 0.0
        %335 = vmatpush2.msra.mxu0 0.0
        %336 = vmatprep.subr.mxu0 0.0
        %337 = vmatpush2.msra.mxu0 0.0
        %338 = vmatprep.subr.mxu0 0.0
        %339 = vmatpush2.msra.mxu0 0.0
        %340 = vmatprep.subr.mxu0 0.0
        %341 = vmatpush2.msra.mxu0 0.0
        %342 = vmatprep.subr.mxu0 0.0
        %343 = vmatpush2.msra.mxu0 0.0
        %344 = vmatprep.subr.mxu0 0.0
        %345 = vmatpush2.msra.mxu0 0.0
        %346 = vmatprep.subr.mxu0 0.0
        %347 = vmatpush2.msra.mxu0 0.0
        %348 = vmatprep.subr.mxu0 0.0
        %349 = vmatpush2.msra.mxu0 0.0
        %350 = vmatprep.subr.mxu0 0.0
        %351 = vmatpush2.msra.mxu0 0.0
        %352 = vmatprep.subr.mxu0 0.0
        %353 = vmatpush2.msra.mxu0 0.0
        %354 = vmatprep.subr.mxu0 0.0
        %355 = vmatpush2.msra.mxu0 0.0
        %356 = vmatprep.mubr.f32.mxu0 0.0
        %357 = vmatmul.mubr.f32.gmra.mxu0 %v274
        %v358 = vpop.f32.mrf.mxu0
        %v359 = vadd.f32 %v257, %v358
        %v360 = vpop.f32.mrf.mxu0
        %v361 = vadd.f32 %v261, %v360
        %362 = vmatprep.mubr.f32.mxu0 0.0
        %363 = vmatmul.mubr.f32.gmra.mxu0 %v277
        %v364 = vpop.f32.mrf.mxu0
        %v365 = vadd.f32 %v257, %v364
        %v366 = vpop.f32.mrf.mxu0
        %v367 = vadd.f32 %v261, %v366
        %368 = vmatprep.mubr.f32.mxu0 0.0
        %369 = vmatmul.mubr.f32.gmra.mxu0 %v280
        %v370 = vpop.f32.mrf.mxu0
        %v371 = vadd.f32 %v257, %v370
        %v372 = vpop.f32.mrf.mxu0
        %v373 = vadd.f32 %v261, %v372
        %374 = vmatprep.mubr.f32.mxu0 0.0
        %375 = vmatmul.mubr.f32.gmra.mxu0 %v283
        %v376 = vpop.f32.mrf.mxu0
        %v377 = vadd.f32 %v257, %v376
        %v378 = vpop.f32.mrf.mxu0
        %v379 = vadd.f32 %v261, %v378
        %380 = vdwg.mxu0
        %381 = vmatprep.subr.mxu0 0.0
        %382 = vmatpush1.msra.mxu0 0.0
        %383 = vmatprep.subr.mxu0 0.0
        %384 = vmatpush1.msra.mxu0 0.0
        %385 = vmatprep.subr.mxu0 0.0
        %386 = vmatpush1.msra.mxu0 0.0
        %387 = vmatprep.subr.mxu0 0.0
        %388 = vmatpush1.msra.mxu0 0.0
        %389 = vmatprep.subr.mxu0 0.0
        %390 = vmatpush1.msra.mxu0 0.0
        %391 = vmatprep.subr.mxu0 0.0
        %392 = vmatpush1.msra.mxu0 0.0
        %393 = vmatprep.subr.mxu0 0.0
        %394 = vmatpush1.msra.mxu0 0.0
        %395 = vmatprep.subr.mxu0 0.0
        %396 = vmatpush1.msra.mxu0 0.0
        %397 = vmatprep.subr.mxu0 0.0
        %398 = vmatpush1.msra.mxu0 0.0
        %399 = vmatprep.subr.mxu0 0.0
        %400 = vmatpush1.msra.mxu0 0.0
        %401 = vmatprep.subr.mxu0 0.0
        %402 = vmatpush1.msra.mxu0 0.0
        %403 = vmatprep.subr.mxu0 0.0
        %404 = vmatpush1.msra.mxu0 0.0
        %405 = vmatprep.subr.mxu0 0.0
        %406 = vmatpush1.msra.mxu0 0.0
        %407 = vmatprep.subr.mxu0 0.0
        %408 = vmatpush1.msra.mxu0 0.0
        %409 = vmatprep.subr.mxu0 0.0
        %410 = vmatpush1.msra.mxu0 0.0
        %411 = vmatprep.subr.mxu0 0.0
        %412 = vmatpush1.msra.mxu0 %v290
        %413 = vmatprep.subr.mxu0 0.0
        %414 = vmatpush2.msra.mxu0 0.0
        %415 = vmatprep.subr.mxu0 0.0
        %416 = vmatpush2.msra.mxu0 0.0
        %417 = vmatprep.subr.mxu0 0.0
        %418 = vmatpush2.msra.mxu0 0.0
        %419 = vmatprep.subr.mxu0 0.0
        %420 = vmatpush2.msra.mxu0 0.0
        %421 = vmatprep.subr.mxu0 0.0
        %422 = vmatpush2.msra.mxu0 0.0
        %423 = vmatprep.subr.mxu0 0.0
        %424 = vmatpush2.msra.mxu0 0.0
        %425 = vmatprep.subr.mxu0 0.0
        %426 = vmatpush2.msra.mxu0 0.0
        %427 = vmatprep.subr.mxu0 0.0
        %428 = vmatpush2.msra.mxu0 0.0
        %429 = vmatprep.subr.mxu0 0.0
        %430 = vmatpush2.msra.mxu0 0.0
        %431 = vmatprep.subr.mxu0 0.0
        %432 = vmatpush2.msra.mxu0 0.0
        %433 = vmatprep.subr.mxu0 0.0
        %434 = vmatpush2.msra.mxu0 0.0
        %435 = vmatprep.subr.mxu0 0.0
        %436 = vmatpush2.msra.mxu0 0.0
        %437 = vmatprep.subr.mxu0 0.0
        %438 = vmatpush2.msra.mxu0 0.0
        %439 = vmatprep.subr.mxu0 0.0
        %440 = vmatpush2.msra.mxu0 0.0
        %441 = vmatprep.subr.mxu0 0.0
        %442 = vmatpush2.msra.mxu0 0.0
        %443 = vmatprep.subr.mxu0 0.0
        %444 = vmatpush2.msra.mxu0 0.0
        %445 = vmatprep.mubr.f32.mxu0 0.0
        %446 = vmatmul.mubr.f32.gmra.mxu0 %v274
        %v447 = vpop.f32.mrf.mxu0
        %v448 = vadd.f32 %v265, %v447
        %v449 = vpop.f32.mrf.mxu0
        %450 = vmatprep.mubr.f32.mxu0 0.0
        %451 = vmatmul.mubr.f32.gmra.mxu0 %v277
        %v452 = vpop.f32.mrf.mxu0
        %v453 = vadd.f32 %v265, %v452
        %v454 = vpop.f32.mrf.mxu0
        %455 = vmatprep.mubr.f32.mxu0 0.0
        %456 = vmatmul.mubr.f32.gmra.mxu0 %v280
        %v457 = vpop.f32.mrf.mxu0
        %v458 = vadd.f32 %v265, %v457
        %v459 = vpop.f32.mrf.mxu0
        %460 = vmatprep.mubr.f32.mxu0 0.0
        %461 = vmatmul.mubr.f32.gmra.mxu0 %v283
        %v462 = vpop.f32.mrf.mxu0
        %v463 = vadd.f32 %v265, %v462
        %v464 = vpop.f32.mrf.mxu0
        %465 = vdwg.mxu0
        %466 = vst [vmem:[#allocation2] sm:$0xff] %v359
        %467 = vst [vmem:[#allocation2 + $0x8] sm:$0xff] %v361
        %468 = vst [vmem:[#allocation2 + $0x10] sm:$0xff] %v448
        %469 = vst [vmem:[#allocation2 + $0x18] sm:$0xff] %v365
        %470 = vst [vmem:[#allocation2 + $0x20] sm:$0xff] %v367
        %471 = vst [vmem:[#allocation2 + $0x28] sm:$0xff] %v453
        %472 = vst [vmem:[#allocation2 + $0x30] sm:$0xff] %v371
        %473 = vst [vmem:[#allocation2 + $0x38] sm:$0xff] %v373
        %474 = vst [vmem:[#allocation2 + $0x40] sm:$0xff] %v458
        %475 = vst [vmem:[#allocation2 + $0x48] sm:$0xff] %v377
        %476 = vst [vmem:[#allocation2 + $0x50] sm:$0xff] %v379
        %477 = vst [vmem:[#allocation2 + $0x58] sm:$0xff] %v463
        %v478 = vld [vmem:[#allocation4] sm:$0xff]
        %v479 = vld [vmem:[#allocation4 + $0x8] sm:$0xff]
        %v480 = vld [vmem:[#allocation4 + $0x10] sm:$0xff]
        %v481 = vld [vmem:[#allocation4 + $0x18] sm:$0xff]
        %v482 = vld [vmem:[#allocation4 + $0x20] sm:$0xff]
        %v483 = vld [vmem:[#allocation4 + $0x28] sm:$0xff]
        %v484 = vld [vmem:[#allocation4 + $0x30] sm:$0xff]
        %v485 = vld [vmem:[#allocation4 + $0x38] sm:$0xff]
        %v486 = vld [vmem:[#allocation4 + $0x40] sm:$0xff]
        %v487 = vld [vmem:[#allocation4 + $0x48] sm:$0xff]
        %v488 = vld [vmem:[#allocation4 + $0x50] sm:$0xff]
        %v489 = vld [vmem:[#allocation4 + $0x58] sm:$0xff]
        %v490 = vld [vmem:[#allocation4 + $0x60] sm:$0xff]
        %v491 = vld [vmem:[#allocation4 + $0x68] sm:$0xff]
        %v492 = vld [vmem:[#allocation4 + $0x70] sm:$0xff]
        %v493 = vld [vmem:[#allocation4 + $0x78] sm:$0xff]
        %v494 = vld [vmem:[#allocation4 + $0x80] sm:$0xff]
        %v495 = vld [vmem:[#allocation4 + $0x88] sm:$0xff]
        %v496 = vld [vmem:[#allocation4 + $0x90] sm:$0xff]
        %v497 = vld [vmem:[#allocation4 + $0x98] sm:$0xff]
        %v498 = vld [vmem:[#allocation4 + $0xa0] sm:$0xff]
        %v499 = vld [vmem:[#allocation4 + $0xa8] sm:$0xff]
        %v500 = vld [vmem:[#allocation4 + $0xb0] sm:$0xff]
        %v501 = vld [vmem:[#allocation4 + $0xb8] sm:$0xff]
        %v502 = vld [vmem:[#allocation4 + $0xc0] sm:$0xff]
        %v503 = vld [vmem:[#allocation4 + $0xc8] sm:$0xff]
        %v504 = vld [vmem:[#allocation4 + $0xd0] sm:$0xff]
        %v505 = vld [vmem:[#allocation4 + $0xd8] sm:$0xff]
        %v506 = vld [vmem:[#allocation4 + $0xe0] sm:$0xff]
        %v507 = vld [vmem:[#allocation4 + $0xe8] sm:$0xff]
        %v508 = vld [vmem:[#allocation4 + $0xf0] sm:$0xff]
        %v509 = vld [vmem:[#allocation4 + $0xf8] sm:$0xff]
        %v510 = vld [vmem:[#allocation4 + $0x100] sm:$0xff]
        %v511 = vld [vmem:[#allocation4 + $0x108] sm:$0xff]
        %v512 = vld [vmem:[#allocation4 + $0x110] sm:$0xff]
        %v513 = vld [vmem:[#allocation4 + $0x118] sm:$0xff]
        %v514 = vld [vmem:[#allocation4 + $0x120] sm:$0xff]
        %v515 = vld [vmem:[#allocation4 + $0x128] sm:$0xff]
        %v516 = vld [vmem:[#allocation4 + $0x130] sm:$0xff]
        %v517 = vld [vmem:[#allocation4 + $0x138] sm:$0xff]
        %v518 = vld [vmem:[#allocation4 + $0x140] sm:$0xff]
        %v519 = vld [vmem:[#allocation4 + $0x148] sm:$0xff]
        %v520 = vld [vmem:[#allocation4 + $0x150] sm:$0xff]
        %v521 = vld [vmem:[#allocation4 + $0x158] sm:$0xff]
        %v522 = vld [vmem:[#allocation4 + $0x160] sm:$0xff]
        %v523 = vld [vmem:[#allocation4 + $0x168] sm:$0xff]
        %v524 = vld [vmem:[#allocation4 + $0x170] sm:$0xff]
        %v525 = vld [vmem:[#allocation4 + $0x178] sm:$0xff]
        %v526 = vld [vmem:[%s4] sm:$0x1]
        %v528 = vlaneseq
        %v529 = vshrl.u32 %v528, 7
        %v530 = vsub.s32 0, %v529
        %v531 = vrot.slane %v526, %v530
        %v533 = vld [vmem:[#allocation3] sm:$0xff]
        %s534 = smul.u32 0, 3
        %s535 = smul.addr %s534, 8
        %s536 = scalar_lea.vmem [#allocation2], %s535
        %v537 = vld [vmem:[%s536] sm:$0xff]
        %v538 = vld [vmem:[%s536 + $0x8] sm:$0xff]
        %v539 = vld [vmem:[%s536 + $0x10] sm:$0xff]
        %540 = vmatprep.subr.mxu0 %v524
        %541 = vmatpush1.msra.mxu0 %v523
        %542 = vmatprep.subr.mxu0 %v521
        %543 = vmatpush1.msra.mxu0 %v520
        %544 = vmatprep.subr.mxu0 %v518
        %545 = vmatpush1.msra.mxu0 %v517
        %546 = vmatprep.subr.mxu0 %v515
        %547 = vmatpush1.msra.mxu0 %v514
        %548 = vmatprep.subr.mxu0 %v512
        %549 = vmatpush1.msra.mxu0 %v511
        %550 = vmatprep.subr.mxu0 %v509
        %551 = vmatpush1.msra.mxu0 %v508
        %552 = vmatprep.subr.mxu0 %v506
        %553 = vmatpush1.msra.mxu0 %v505
        %554 = vmatprep.subr.mxu0 %v503
        %555 = vmatpush1.msra.mxu0 %v502
        %556 = vmatprep.subr.mxu0 %v500
        %557 = vmatpush1.msra.mxu0 %v499
        %558 = vmatprep.subr.mxu0 %v497
        %559 = vmatpush1.msra.mxu0 %v496
        %560 = vmatprep.subr.mxu0 %v494
        %561 = vmatpush1.msra.mxu0 %v493
        %562 = vmatprep.subr.mxu0 %v491
        %563 = vmatpush1.msra.mxu0 %v490
        %564 = vmatprep.subr.mxu0 %v488
        %565 = vmatpush1.msra.mxu0 %v487
        %566 = vmatprep.subr.mxu0 %v485
        %567 = vmatpush1.msra.mxu0 %v484
        %568 = vmatprep.subr.mxu0 %v482
        %569 = vmatpush1.msra.mxu0 %v481
        %570 = vmatprep.subr.mxu0 %v479
        %571 = vmatpush1.msra.mxu0 %v478
        %572 = vmatprep.subr.mxu0 0.0
        %573 = vmatpush2.msra.mxu0 0.0
        %574 = vmatprep.subr.mxu0 0.0
        %575 = vmatpush2.msra.mxu0 0.0
        %576 = vmatprep.subr.mxu0 0.0
        %577 = vmatpush2.msra.mxu0 0.0
        %578 = vmatprep.subr.mxu0 0.0
        %579 = vmatpush2.msra.mxu0 0.0
        %580 = vmatprep.subr.mxu0 0.0
        %581 = vmatpush2.msra.mxu0 0.0
        %582 = vmatprep.subr.mxu0 0.0
        %583 = vmatpush2.msra.mxu0 0.0
        %584 = vmatprep.subr.mxu0 0.0
        %585 = vmatpush2.msra.mxu0 0.0
        %586 = vmatprep.subr.mxu0 0.0
        %587 = vmatpush2.msra.mxu0 0.0
        %588 = vmatprep.subr.mxu0 0.0
        %589 = vmatpush2.msra.mxu0 0.0
        %590 = vmatprep.subr.mxu0 0.0
        %591 = vmatpush2.msra.mxu0 0.0
        %592 = vmatprep.subr.mxu0 0.0
        %593 = vmatpush2.msra.mxu0 0.0
        %594 = vmatprep.subr.mxu0 0.0
        %595 = vmatpush2.msra.mxu0 0.0
        %596 = vmatprep.subr.mxu0 0.0
        %597 = vmatpush2.msra.mxu0 0.0
        %598 = vmatprep.subr.mxu0 0.0
        %599 = vmatpush2.msra.mxu0 0.0
        %600 = vmatprep.subr.mxu0 0.0
        %601 = vmatpush2.msra.mxu0 0.0
        %602 = vmatprep.subr.mxu0 0.0
        %603 = vmatpush2.msra.mxu0 0.0
        %604 = vmatprep.mubr.f32.mxu0 0.0
        %605 = vmatmul.mubr.f32.gmra.mxu0 %v533
        %v606 = vpop.f32.mrf.mxu0
        %v607 = vadd.f32 0.0, %v606
        %v608 = vpop.f32.mrf.mxu0
        %v609 = vadd.f32 0.0, %v608
        %610 = vdwg.mxu0
        %611 = vmatprep.subr.mxu0 0.0
        %612 = vmatpush1.msra.mxu0 %v525
        %613 = vmatprep.subr.mxu0 0.0
        %614 = vmatpush1.msra.mxu0 %v522
        %615 = vmatprep.subr.mxu0 0.0
        %616 = vmatpush1.msra.mxu0 %v519
        %617 = vmatprep.subr.mxu0 0.0
        %618 = vmatpush1.msra.mxu0 %v516
        %619 = vmatprep.subr.mxu0 0.0
        %620 = vmatpush1.msra.mxu0 %v513
        %621 = vmatprep.subr.mxu0 0.0
        %622 = vmatpush1.msra.mxu0 %v510
        %623 = vmatprep.subr.mxu0 0.0
        %624 = vmatpush1.msra.mxu0 %v507
        %625 = vmatprep.subr.mxu0 0.0
        %626 = vmatpush1.msra.mxu0 %v504
        %627 = vmatprep.subr.mxu0 0.0
        %628 = vmatpush1.msra.mxu0 %v501
        %629 = vmatprep.subr.mxu0 0.0
        %630 = vmatpush1.msra.mxu0 %v498
        %631 = vmatprep.subr.mxu0 0.0
        %632 = vmatpush1.msra.mxu0 %v495
        %633 = vmatprep.subr.mxu0 0.0
        %634 = vmatpush1.msra.mxu0 %v492
        %635 = vmatprep.subr.mxu0 0.0
        %636 = vmatpush1.msra.mxu0 %v489
        %637 = vmatprep.subr.mxu0 0.0
        %638 = vmatpush1.msra.mxu0 %v486
        %639 = vmatprep.subr.mxu0 0.0
        %640 = vmatpush1.msra.mxu0 %v483
        %641 = vmatprep.subr.mxu0 0.0
        %642 = vmatpush1.msra.mxu0 %v480
        %643 = vmatprep.subr.mxu0 0.0
        %644 = vmatpush2.msra.mxu0 0.0
        %645 = vmatprep.subr.mxu0 0.0
        %646 = vmatpush2.msra.mxu0 0.0
        %647 = vmatprep.subr.mxu0 0.0
        %648 = vmatpush2.msra.mxu0 0.0
        %649 = vmatprep.subr.mxu0 0.0
        %650 = vmatpush2.msra.mxu0 0.0
        %651 = vmatprep.subr.mxu0 0.0
        %652 = vmatpush2.msra.mxu0 0.0
        %653 = vmatprep.subr.mxu0 0.0
        %654 = vmatpush2.msra.mxu0 0.0
        %655 = vmatprep.subr.mxu0 0.0
        %656 = vmatpush2.msra.mxu0 0.0
        %657 = vmatprep.subr.mxu0 0.0
        %658 = vmatpush2.msra.mxu0 0.0
        %659 = vmatprep.subr.mxu0 0.0
        %660 = vmatpush2.msra.mxu0 0.0
        %661 = vmatprep.subr.mxu0 0.0
        %662 = vmatpush2.msra.mxu0 0.0
        %663 = vmatprep.subr.mxu0 0.0
        %664 = vmatpush2.msra.mxu0 0.0
        %665 = vmatprep.subr.mxu0 0.0
        %666 = vmatpush2.msra.mxu0 0.0
        %667 = vmatprep.subr.mxu0 0.0
        %668 = vmatpush2.msra.mxu0 0.0
        %669 = vmatprep.subr.mxu0 0.0
        %670 = vmatpush2.msra.mxu0 0.0
        %671 = vmatprep.subr.mxu0 0.0
        %672 = vmatpush2.msra.mxu0 0.0
        %673 = vmatprep.subr.mxu0 0.0
        %674 = vmatpush2.msra.mxu0 0.0
        %675 = vmatprep.mubr.f32.mxu0 0.0
        %676 = vmatmul.mubr.f32.gmra.mxu0 %v533
        %v677 = vpop.f32.mrf.mxu0
        %v678 = vadd.f32 0.0, %v677
        %v679 = vpop.f32.mrf.mxu0
        %680 = vdwg.mxu0
        %v681 = vadd.f32 %v537, %v607
        %v682 = vadd.f32 %v538, %v609
        %v683 = vxor.u32 %v681, 2147483648
        %v684 = vxor.u32 %v682, 2147483648
        %v685 = vmul.f32 %v683, 1.442695
        %v686 = vpow.pop %v685
        %v687 = vmul.f32 %v684, 1.442695
        %v688 = vpow.pop %v687
        %v689 = vadd.f32 %v686, 1.0
        %v690 = vadd.f32 %v688, 1.0
        %v691 = vrcp.pop %v689
        %v692 = vmul.f32 1.0, %v691
        %v693 = vrcp.pop %v690
        %v694 = vmul.f32 1.0, %v693
        %v695 = vadd.f32 %v678, %v531
        %v696 = vmul.f32 %v692, %v695
        %v697 = vadd.f32 %v539, %v696
        %v698 = vtanh.pop %v697
        %v699 = vsub.f32 1.0, %v694
        %v700 = vmul.f32 %v699, %v698
        %v701 = vmul.f32 %v694, %v533
        %v702 = vadd.f32 %v700, %v701
        %703 = vst [vmem:[%s233] sm:$0xff] %v702
        %s704 = smul.u32 1, 3
        %s705 = smul.addr %s704, 8
        %s706 = scalar_lea.vmem [#allocation2], %s705
        %v707 = vld [vmem:[%s706] sm:$0xff]
        %v708 = vld [vmem:[%s706 + $0x8] sm:$0xff]
        %v709 = vld [vmem:[%s706 + $0x10] sm:$0xff]
        %710 = vmatprep.subr.mxu0 %v524
        %711 = vmatpush1.msra.mxu0 %v523
        %712 = vmatprep.subr.mxu0 %v521
        %713 = vmatpush1.msra.mxu0 %v520
        %714 = vmatprep.subr.mxu0 %v518
        %715 = vmatpush1.msra.mxu0 %v517
        %716 = vmatprep.subr.mxu0 %v515
        %717 = vmatpush1.msra.mxu0 %v514
        %718 = vmatprep.subr.mxu0 %v512
        %719 = vmatpush1.msra.mxu0 %v511
        %720 = vmatprep.subr.mxu0 %v509
        %721 = vmatpush1.msra.mxu0 %v508
        %722 = vmatprep.subr.mxu0 %v506
        %723 = vmatpush1.msra.mxu0 %v505
        %724 = vmatprep.subr.mxu0 %v503
        %725 = vmatpush1.msra.mxu0 %v502
        %726 = vmatprep.subr.mxu0 %v500
        %727 = vmatpush1.msra.mxu0 %v499
        %728 = vmatprep.subr.mxu0 %v497
        %729 = vmatpush1.msra.mxu0 %v496
        %730 = vmatprep.subr.mxu0 %v494
        %731 = vmatpush1.msra.mxu0 %v493
        %732 = vmatprep.subr.mxu0 %v491
        %733 = vmatpush1.msra.mxu0 %v490
        %734 = vmatprep.subr.mxu0 %v488
        %735 = vmatpush1.msra.mxu0 %v487
        %736 = vmatprep.subr.mxu0 %v485
        %737 = vmatpush1.msra.mxu0 %v484
        %738 = vmatprep.subr.mxu0 %v482
        %739 = vmatpush1.msra.mxu0 %v481
        %740 = vmatprep.subr.mxu0 %v479
        %741 = vmatpush1.msra.mxu0 %v478
        %742 = vmatprep.subr.mxu0 0.0
        %743 = vmatpush2.msra.mxu0 0.0
        %744 = vmatprep.subr.mxu0 0.0
        %745 = vmatpush2.msra.mxu0 0.0
        %746 = vmatprep.subr.mxu0 0.0
        %747 = vmatpush2.msra.mxu0 0.0
        %748 = vmatprep.subr.mxu0 0.0
        %749 = vmatpush2.msra.mxu0 0.0
        %750 = vmatprep.subr.mxu0 0.0
        %751 = vmatpush2.msra.mxu0 0.0
        %752 = vmatprep.subr.mxu0 0.0
        %753 = vmatpush2.msra.mxu0 0.0
        %754 = vmatprep.subr.mxu0 0.0
        %755 = vmatpush2.msra.mxu0 0.0
        %756 = vmatprep.subr.mxu0 0.0
        %757 = vmatpush2.msra.mxu0 0.0
        %758 = vmatprep.subr.mxu0 0.0
        %759 = vmatpush2.msra.mxu0 0.0
        %760 = vmatprep.subr.mxu0 0.0
        %761 = vmatpush2.msra.mxu0 0.0
        %762 = vmatprep.subr.mxu0 0.0
        %763 = vmatpush2.msra.mxu0 0.0
        %764 = vmatprep.subr.mxu0 0.0
        %765 = vmatpush2.msra.mxu0 0.0
        %766 = vmatprep.subr.mxu0 0.0
        %767 = vmatpush2.msra.mxu0 0.0
        %768 = vmatprep.subr.mxu0 0.0
        %769 = vmatpush2.msra.mxu0 0.0
        %770 = vmatprep.subr.mxu0 0.0
        %771 = vmatpush2.msra.mxu0 0.0
        %772 = vmatprep.subr.mxu0 0.0
        %773 = vmatpush2.msra.mxu0 0.0
        %774 = vmatprep.mubr.f32.mxu0 0.0
        %775 = vmatmul.mubr.f32.gmra.mxu0 %v702
        %v776 = vpop.f32.mrf.mxu0
        %v777 = vadd.f32 0.0, %v776
        %v778 = vpop.f32.mrf.mxu0
        %v779 = vadd.f32 0.0, %v778
        %780 = vdwg.mxu0
        %781 = vmatprep.subr.mxu0 0.0
        %782 = vmatpush1.msra.mxu0 %v525
        %783 = vmatprep.subr.mxu0 0.0
        %784 = vmatpush1.msra.mxu0 %v522
        %785 = vmatprep.subr.mxu0 0.0
        %786 = vmatpush1.msra.mxu0 %v519
        %787 = vmatprep.subr.mxu0 0.0
        %788 = vmatpush1.msra.mxu0 %v516
        %789 = vmatprep.subr.mxu0 0.0
        %790 = vmatpush1.msra.mxu0 %v513
        %791 = vmatprep.subr.mxu0 0.0
        %792 = vmatpush1.msra.mxu0 %v510
        %793 = vmatprep.subr.mxu0 0.0
        %794 = vmatpush1.msra.mxu0 %v507
        %795 = vmatprep.subr.mxu0 0.0
        %796 = vmatpush1.msra.mxu0 %v504
        %797 = vmatprep.subr.mxu0 0.0
        %798 = vmatpush1.msra.mxu0 %v501
        %799 = vmatprep.subr.mxu0 0.0
        %800 = vmatpush1.msra.mxu0 %v498
        %801 = vmatprep.subr.mxu0 0.0
        %802 = vmatpush1.msra.mxu0 %v495
        %803 = vmatprep.subr.mxu0 0.0
        %804 = vmatpush1.msra.mxu0 %v492
        %805 = vmatprep.subr.mxu0 0.0
        %806 = vmatpush1.msra.mxu0 %v489
        %807 = vmatprep.subr.mxu0 0.0
        %808 = vmatpush1.msra.mxu0 %v486
        %809 = vmatprep.subr.mxu0 0.0
        %810 = vmatpush1.msra.mxu0 %v483
        %811 = vmatprep.subr.mxu0 0.0
        %812 = vmatpush1.msra.mxu0 %v480
        %813 = vmatprep.subr.mxu0 0.0
        %814 = vmatpush2.msra.mxu0 0.0
        %815 = vmatprep.subr.mxu0 0.0
        %816 = vmatpush2.msra.mxu0 0.0
        %817 = vmatprep.subr.mxu0 0.0
        %818 = vmatpush2.msra.mxu0 0.0
        %819 = vmatprep.subr.mxu0 0.0
        %820 = vmatpush2.msra.mxu0 0.0
        %821 = vmatprep.subr.mxu0 0.0
        %822 = vmatpush2.msra.mxu0 0.0
        %823 = vmatprep.subr.mxu0 0.0
        %824 = vmatpush2.msra.mxu0 0.0
        %825 = vmatprep.subr.mxu0 0.0
        %826 = vmatpush2.msra.mxu0 0.0
        %827 = vmatprep.subr.mxu0 0.0
        %828 = vmatpush2.msra.mxu0 0.0
        %829 = vmatprep.subr.mxu0 0.0
        %830 = vmatpush2.msra.mxu0 0.0
        %831 = vmatprep.subr.mxu0 0.0
        %832 = vmatpush2.msra.mxu0 0.0
        %833 = vmatprep.subr.mxu0 0.0
        %834 = vmatpush2.msra.mxu0 0.0
        %835 = vmatprep.subr.mxu0 0.0
        %836 = vmatpush2.msra.mxu0 0.0
        %837 = vmatprep.subr.mxu0 0.0
        %838 = vmatpush2.msra.mxu0 0.0
        %839 = vmatprep.subr.mxu0 0.0
        %840 = vmatpush2.msra.mxu0 0.0
        %841 = vmatprep.subr.mxu0 0.0
        %842 = vmatpush2.msra.mxu0 0.0
        %843 = vmatprep.subr.mxu0 0.0
        %844 = vmatpush2.msra.mxu0 0.0
        %845 = vmatprep.mubr.f32.mxu0 0.0
        %846 = vmatmul.mubr.f32.gmra.mxu0 %v702
        %v847 = vpop.f32.mrf.mxu0
        %v848 = vadd.f32 0.0, %v847
        %v849 = vpop.f32.mrf.mxu0
        %850 = vdwg.mxu0
        %v851 = vadd.f32 %v707, %v777
        %v852 = vadd.f32 %v708, %v779
        %v853 = vxor.u32 %v851, 2147483648
        %v854 = vxor.u32 %v852, 2147483648
        %v855 = vmul.f32 %v853, 1.442695
        %v856 = vpow.pop %v855
        %v857 = vmul.f32 %v854, 1.442695
        %v858 = vpow.pop %v857
        %v859 = vadd.f32 %v856, 1.0
        %v860 = vadd.f32 %v858, 1.0
        %v861 = vrcp.pop %v859
        %v862 = vmul.f32 1.0, %v861
        %v863 = vrcp.pop %v860
        %v864 = vmul.f32 1.0, %v863
        %v865 = vadd.f32 %v848, %v531
        %v866 = vmul.f32 %v862, %v865
        %v867 = vadd.f32 %v709, %v866
        %v868 = vtanh.pop %v867
        %v869 = vsub.f32 1.0, %v864
        %v870 = vmul.f32 %v869, %v868
        %v871 = vmul.f32 %v864, %v702
        %v872 = vadd.f32 %v870, %v871
        %s873 = scalar_lea.vmem %s233, 8 [#allocation7]
        %874 = vst [vmem:[%s873] sm:$0xff] %v872
        %s875 = smul.u32 2, 3
        %s876 = smul.addr %s875, 8
        %s877 = scalar_lea.vmem [#allocation2], %s876
        %v878 = vld [vmem:[%s877] sm:$0xff]
        %v879 = vld [vmem:[%s877 + $0x8] sm:$0xff]
        %v880 = vld [vmem:[%s877 + $0x10] sm:$0xff]
        %881 = vmatprep.subr.mxu0 %v524
        %882 = vmatpush1.msra.mxu0 %v523
        %883 = vmatprep.subr.mxu0 %v521
        %884 = vmatpush1.msra.mxu0 %v520
        %885 = vmatprep.subr.mxu0 %v518
        %886 = vmatpush1.msra.mxu0 %v517
        %887 = vmatprep.subr.mxu0 %v515
        %888 = vmatpush1.msra.mxu0 %v514
        %889 = vmatprep.subr.mxu0 %v512
        %890 = vmatpush1.msra.mxu0 %v511
        %891 = vmatprep.subr.mxu0 %v509
        %892 = vmatpush1.msra.mxu0 %v508
        %893 = vmatprep.subr.mxu0 %v506
        %894 = vmatpush1.msra.mxu0 %v505
        %895 = vmatprep.subr.mxu0 %v503
        %896 = vmatpush1.msra.mxu0 %v502
        %897 = vmatprep.subr.mxu0 %v500
        %898 = vmatpush1.msra.mxu0 %v499
        %899 = vmatprep.subr.mxu0 %v497
        %900 = vmatpush1.msra.mxu0 %v496
        %901 = vmatprep.subr.mxu0 %v494
        %902 = vmatpush1.msra.mxu0 %v493
        %903 = vmatprep.subr.mxu0 %v491
        %904 = vmatpush1.msra.mxu0 %v490
        %905 = vmatprep.subr.mxu0 %v488
        %906 = vmatpush1.msra.mxu0 %v487
        %907 = vmatprep.subr.mxu0 %v485
        %908 = vmatpush1.msra.mxu0 %v484
        %909 = vmatprep.subr.mxu0 %v482
        %910 = vmatpush1.msra.mxu0 %v481
        %911 = vmatprep.subr.mxu0 %v479
        %912 = vmatpush1.msra.mxu0 %v478
        %913 = vmatprep.subr.mxu0 0.0
        %914 = vmatpush2.msra.mxu0 0.0
        %915 = vmatprep.subr.mxu0 0.0
        %916 = vmatpush2.msra.mxu0 0.0
        %917 = vmatprep.subr.mxu0 0.0
        %918 = vmatpush2.msra.mxu0 0.0
        %919 = vmatprep.subr.mxu0 0.0
        %920 = vmatpush2.msra.mxu0 0.0
        %921 = vmatprep.subr.mxu0 0.0
        %922 = vmatpush2.msra.mxu0 0.0
        %923 = vmatprep.subr.mxu0 0.0
        %924 = vmatpush2.msra.mxu0 0.0
        %925 = vmatprep.subr.mxu0 0.0
        %926 = vmatpush2.msra.mxu0 0.0
        %927 = vmatprep.subr.mxu0 0.0
        %928 = vmatpush2.msra.mxu0 0.0
        %929 = vmatprep.subr.mxu0 0.0
        %930 = vmatpush2.msra.mxu0 0.0
        %931 = vmatprep.subr.mxu0 0.0
        %932 = vmatpush2.msra.mxu0 0.0
        %933 = vmatprep.subr.mxu0 0.0
        %934 = vmatpush2.msra.mxu0 0.0
        %935 = vmatprep.subr.mxu0 0.0
        %936 = vmatpush2.msra.mxu0 0.0
        %937 = vmatprep.subr.mxu0 0.0
        %938 = vmatpush2.msra.mxu0 0.0
        %939 = vmatprep.subr.mxu0 0.0
        %940 = vmatpush2.msra.mxu0 0.0
        %941 = vmatprep.subr.mxu0 0.0
        %942 = vmatpush2.msra.mxu0 0.0
        %943 = vmatprep.subr.mxu0 0.0
        %944 = vmatpush2.msra.mxu0 0.0
        %945 = vmatprep.mubr.f32.mxu0 0.0
        %946 = vmatmul.mubr.f32.gmra.mxu0 %v872
        %v947 = vpop.f32.mrf.mxu0
        %v948 = vadd.f32 0.0, %v947
        %v949 = vpop.f32.mrf.mxu0
        %v950 = vadd.f32 0.0, %v949
        %951 = vdwg.mxu0
        %952 = vmatprep.subr.mxu0 0.0
        %953 = vmatpush1.msra.mxu0 %v525
        %954 = vmatprep.subr.mxu0 0.0
        %955 = vmatpush1.msra.mxu0 %v522
        %956 = vmatprep.subr.mxu0 0.0
        %957 = vmatpush1.msra.mxu0 %v519
        %958 = vmatprep.subr.mxu0 0.0
        %959 = vmatpush1.msra.mxu0 %v516
        %960 = vmatprep.subr.mxu0 0.0
        %961 = vmatpush1.msra.mxu0 %v513
        %962 = vmatprep.subr.mxu0 0.0
        %963 = vmatpush1.msra.mxu0 %v510
        %964 = vmatprep.subr.mxu0 0.0
        %965 = vmatpush1.msra.mxu0 %v507
        %966 = vmatprep.subr.mxu0 0.0
        %967 = vmatpush1.msra.mxu0 %v504
        %968 = vmatprep.subr.mxu0 0.0
        %969 = vmatpush1.msra.mxu0 %v501
        %970 = vmatprep.subr.mxu0 0.0
        %971 = vmatpush1.msra.mxu0 %v498
        %972 = vmatprep.subr.mxu0 0.0
        %973 = vmatpush1.msra.mxu0 %v495
        %974 = vmatprep.subr.mxu0 0.0
        %975 = vmatpush1.msra.mxu0 %v492
        %976 = vmatprep.subr.mxu0 0.0
        %977 = vmatpush1.msra.mxu0 %v489
        %978 = vmatprep.subr.mxu0 0.0
        %979 = vmatpush1.msra.mxu0 %v486
        %980 = vmatprep.subr.mxu0 0.0
        %981 = vmatpush1.msra.mxu0 %v483
        %982 = vmatprep.subr.mxu0 0.0
        %983 = vmatpush1.msra.mxu0 %v480
        %984 = vmatprep.subr.mxu0 0.0
        %985 = vmatpush2.msra.mxu0 0.0
        %986 = vmatprep.subr.mxu0 0.0
        %987 = vmatpush2.msra.mxu0 0.0
        %988 = vmatprep.subr.mxu0 0.0
        %989 = vmatpush2.msra.mxu0 0.0
        %990 = vmatprep.subr.mxu0 0.0
        %991 = vmatpush2.msra.mxu0 0.0
        %992 = vmatprep.subr.mxu0 0.0
        %993 = vmatpush2.msra.mxu0 0.0
        %994 = vmatprep.subr.mxu0 0.0
        %995 = vmatpush2.msra.mxu0 0.0
        %996 = vmatprep.subr.mxu0 0.0
        %997 = vmatpush2.msra.mxu0 0.0
        %998 = vmatprep.subr.mxu0 0.0
        %999 = vmatpush2.msra.mxu0 0.0
        %1000 = vmatprep.subr.mxu0 0.0
        %1001 = vmatpush2.msra.mxu0 0.0
        %1002 = vmatprep.subr.mxu0 0.0
        %1003 = vmatpush2.msra.mxu0 0.0
        %1004 = vmatprep.subr.mxu0 0.0
        %1005 = vmatpush2.msra.mxu0 0.0
        %1006 = vmatprep.subr.mxu0 0.0
        %1007 = vmatpush2.msra.mxu0 0.0
        %1008 = vmatprep.subr.mxu0 0.0
        %1009 = vmatpush2.msra.mxu0 0.0
        %1010 = vmatprep.subr.mxu0 0.0
        %1011 = vmatpush2.msra.mxu0 0.0
        %1012 = vmatprep.subr.mxu0 0.0
        %1013 = vmatpush2.msra.mxu0 0.0
        %1014 = vmatprep.subr.mxu0 0.0
        %1015 = vmatpush2.msra.mxu0 0.0
        %1016 = vmatprep.mubr.f32.mxu0 0.0
        %1017 = vmatmul.mubr.f32.gmra.mxu0 %v872
        %v1018 = vpop.f32.mrf.mxu0
        %v1019 = vadd.f32 0.0, %v1018
        %v1020 = vpop.f32.mrf.mxu0
        %1021 = vdwg.mxu0
        %v1022 = vadd.f32 %v878, %v948
        %v1023 = vadd.f32 %v879, %v950
        %v1024 = vxor.u32 %v1022, 2147483648
        %v1025 = vxor.u32 %v1023, 2147483648
        %v1026 = vmul.f32 %v1024, 1.442695
        %v1027 = vpow.pop %v1026
        %v1028 = vmul.f32 %v1025, 1.442695
        %v1029 = vpow.pop %v1028
        %v1030 = vadd.f32 %v1027, 1.0
        %v1031 = vadd.f32 %v1029, 1.0
        %v1032 = vrcp.pop %v1030
        %v1033 = vmul.f32 1.0, %v1032
        %v1034 = vrcp.pop %v1031
        %v1035 = vmul.f32 1.0, %v1034
        %v1036 = vadd.f32 %v1019, %v531
        %v1037 = vmul.f32 %v1033, %v1036
        %v1038 = vadd.f32 %v880, %v1037
        %v1039 = vtanh.pop %v1038
        %v1040 = vsub.f32 1.0, %v1035
        %v1041 = vmul.f32 %v1040, %v1039
        %v1042 = vmul.f32 %v1035, %v872
        %v1043 = vadd.f32 %v1041, %v1042
        %s1044 = scalar_lea.vmem %s233, 16 [#allocation7]
        %1045 = vst [vmem:[%s1044] sm:$0xff] %v1043
        %s1046 = smul.u32 3, 3
        %s1047 = smul.addr %s1046, 8
        %s1048 = scalar_lea.vmem [#allocation2], %s1047
        %v1049 = vld [vmem:[%s1048] sm:$0xff]
        %v1050 = vld [vmem:[%s1048 + $0x8] sm:$0xff]
        %v1051 = vld [vmem:[%s1048 + $0x10] sm:$0xff]
        %1052 = vmatprep.subr.mxu0 %v524
        %1053 = vmatpush1.msra.mxu0 %v523
        %1054 = vmatprep.subr.mxu0 %v521
        %1055 = vmatpush1.msra.mxu0 %v520
        %1056 = vmatprep.subr.mxu0 %v518
        %1057 = vmatpush1.msra.mxu0 %v517
        %1058 = vmatprep.subr.mxu0 %v515
        %1059 = vmatpush1.msra.mxu0 %v514
        %1060 = vmatprep.subr.mxu0 %v512
        %1061 = vmatpush1.msra.mxu0 %v511
        %1062 = vmatprep.subr.mxu0 %v509
        %1063 = vmatpush1.msra.mxu0 %v508
        %1064 = vmatprep.subr.mxu0 %v506
        %1065 = vmatpush1.msra.mxu0 %v505
        %1066 = vmatprep.subr.mxu0 %v503
        %1067 = vmatpush1.msra.mxu0 %v502
        %1068 = vmatprep.subr.mxu0 %v500
        %1069 = vmatpush1.msra.mxu0 %v499
        %1070 = vmatprep.subr.mxu0 %v497
        %1071 = vmatpush1.msra.mxu0 %v496
        %1072 = vmatprep.subr.mxu0 %v494
        %1073 = vmatpush1.msra.mxu0 %v493
        %1074 = vmatprep.subr.mxu0 %v491
        %1075 = vmatpush1.msra.mxu0 %v490
        %1076 = vmatprep.subr.mxu0 %v488
        %1077 = vmatpush1.msra.mxu0 %v487
        %1078 = vmatprep.subr.mxu0 %v485
        %1079 = vmatpush1.msra.mxu0 %v484
        %1080 = vmatprep.subr.mxu0 %v482
        %1081 = vmatpush1.msra.mxu0 %v481
        %1082 = vmatprep.subr.mxu0 %v479
        %1083 = vmatpush1.msra.mxu0 %v478
        %1084 = vmatprep.subr.mxu0 0.0
        %1085 = vmatpush2.msra.mxu0 0.0
        %1086 = vmatprep.subr.mxu0 0.0
        %1087 = vmatpush2.msra.mxu0 0.0
        %1088 = vmatprep.subr.mxu0 0.0
        %1089 = vmatpush2.msra.mxu0 0.0
        %1090 = vmatprep.subr.mxu0 0.0
        %1091 = vmatpush2.msra.mxu0 0.0
        %1092 = vmatprep.subr.mxu0 0.0
        %1093 = vmatpush2.msra.mxu0 0.0
        %1094 = vmatprep.subr.mxu0 0.0
        %1095 = vmatpush2.msra.mxu0 0.0
        %1096 = vmatprep.subr.mxu0 0.0
        %1097 = vmatpush2.msra.mxu0 0.0
        %1098 = vmatprep.subr.mxu0 0.0
        %1099 = vmatpush2.msra.mxu0 0.0
        %1100 = vmatprep.subr.mxu0 0.0
        %1101 = vmatpush2.msra.mxu0 0.0
        %1102 = vmatprep.subr.mxu0 0.0
        %1103 = vmatpush2.msra.mxu0 0.0
        %1104 = vmatprep.subr.mxu0 0.0
        %1105 = vmatpush2.msra.mxu0 0.0
        %1106 = vmatprep.subr.mxu0 0.0
        %1107 = vmatpush2.msra.mxu0 0.0
        %1108 = vmatprep.subr.mxu0 0.0
        %1109 = vmatpush2.msra.mxu0 0.0
        %1110 = vmatprep.subr.mxu0 0.0
        %1111 = vmatpush2.msra.mxu0 0.0
        %1112 = vmatprep.subr.mxu0 0.0
        %1113 = vmatpush2.msra.mxu0 0.0
        %1114 = vmatprep.subr.mxu0 0.0
        %1115 = vmatpush2.msra.mxu0 0.0
        %1116 = vmatprep.mubr.f32.mxu0 0.0
        %1117 = vmatmul.mubr.f32.gmra.mxu0 %v1043
        %v1118 = vpop.f32.mrf.mxu0
        %v1119 = vadd.f32 0.0, %v1118
        %v1120 = vpop.f32.mrf.mxu0
        %v1121 = vadd.f32 0.0, %v1120
        %1122 = vdwg.mxu0
        %1123 = vmatprep.subr.mxu0 0.0
        %1124 = vmatpush1.msra.mxu0 %v525
        %1125 = vmatprep.subr.mxu0 0.0
        %1126 = vmatpush1.msra.mxu0 %v522
        %1127 = vmatprep.subr.mxu0 0.0
        %1128 = vmatpush1.msra.mxu0 %v519
        %1129 = vmatprep.subr.mxu0 0.0
        %1130 = vmatpush1.msra.mxu0 %v516
        %1131 = vmatprep.subr.mxu0 0.0
        %1132 = vmatpush1.msra.mxu0 %v513
        %1133 = vmatprep.subr.mxu0 0.0
        %1134 = vmatpush1.msra.mxu0 %v510
        %1135 = vmatprep.subr.mxu0 0.0
        %1136 = vmatpush1.msra.mxu0 %v507
        %1137 = vmatprep.subr.mxu0 0.0
        %1138 = vmatpush1.msra.mxu0 %v504
        %1139 = vmatprep.subr.mxu0 0.0
        %1140 = vmatpush1.msra.mxu0 %v501
        %1141 = vmatprep.subr.mxu0 0.0
        %1142 = vmatpush1.msra.mxu0 %v498
        %1143 = vmatprep.subr.mxu0 0.0
        %1144 = vmatpush1.msra.mxu0 %v495
        %1145 = vmatprep.subr.mxu0 0.0
        %1146 = vmatpush1.msra.mxu0 %v492
        %1147 = vmatprep.subr.mxu0 0.0
        %1148 = vmatpush1.msra.mxu0 %v489
        %1149 = vmatprep.subr.mxu0 0.0
        %1150 = vmatpush1.msra.mxu0 %v486
        %1151 = vmatprep.subr.mxu0 0.0
        %1152 = vmatpush1.msra.mxu0 %v483
        %1153 = vmatprep.subr.mxu0 0.0
        %1154 = vmatpush1.msra.mxu0 %v480
        %1155 = vmatprep.subr.mxu0 0.0
        %1156 = vmatpush2.msra.mxu0 0.0
        %1157 = vmatprep.subr.mxu0 0.0
        %1158 = vmatpush2.msra.mxu0 0.0
        %1159 = vmatprep.subr.mxu0 0.0
        %1160 = vmatpush2.msra.mxu0 0.0
        %1161 = vmatprep.subr.mxu0 0.0
        %1162 = vmatpush2.msra.mxu0 0.0
        %1163 = vmatprep.subr.mxu0 0.0
        %1164 = vmatpush2.msra.mxu0 0.0
        %1165 = vmatprep.subr.mxu0 0.0
        %1166 = vmatpush2.msra.mxu0 0.0
        %1167 = vmatprep.subr.mxu0 0.0
        %1168 = vmatpush2.msra.mxu0 0.0
        %1169 = vmatprep.subr.mxu0 0.0
        %1170 = vmatpush2.msra.mxu0 0.0
        %1171 = vmatprep.subr.mxu0 0.0
        %1172 = vmatpush2.msra.mxu0 0.0
        %1173 = vmatprep.subr.mxu0 0.0
        %1174 = vmatpush2.msra.mxu0 0.0
        %1175 = vmatprep.subr.mxu0 0.0
        %1176 = vmatpush2.msra.mxu0 0.0
        %1177 = vmatprep.subr.mxu0 0.0
        %1178 = vmatpush2.msra.mxu0 0.0
        %1179 = vmatprep.subr.mxu0 0.0
        %1180 = vmatpush2.msra.mxu0 0.0
        %1181 = vmatprep.subr.mxu0 0.0
        %1182 = vmatpush2.msra.mxu0 0.0
        %1183 = vmatprep.subr.mxu0 0.0
        %1184 = vmatpush2.msra.mxu0 0.0
        %1185 = vmatprep.subr.mxu0 0.0
        %1186 = vmatpush2.msra.mxu0 0.0
        %1187 = vmatprep.mubr.f32.mxu0 0.0
        %1188 = vmatmul.mubr.f32.gmra.mxu0 %v1043
        %v1189 = vpop.f32.mrf.mxu0
        %v1190 = vadd.f32 0.0, %v1189
        %v1191 = vpop.f32.mrf.mxu0
        %1192 = vdwg.mxu0
        %v1193 = vadd.f32 %v1049, %v1119
        %v1194 = vadd.f32 %v1050, %v1121
        %v1195 = vxor.u32 %v1193, 2147483648
        %v1196 = vxor.u32 %v1194, 2147483648
        %v1197 = vmul.f32 %v1195, 1.442695
        %v1198 = vpow.pop %v1197
        %v1199 = vmul.f32 %v1196, 1.442695
        %v1200 = vpow.pop %v1199
        %v1201 = vadd.f32 %v1198, 1.0
        %v1202 = vadd.f32 %v1200, 1.0
        %v1203 = vrcp.pop %v1201
        %v1204 = vmul.f32 1.0, %v1203
        %v1205 = vrcp.pop %v1202
        %v1206 = vmul.f32 1.0, %v1205
        %v1207 = vadd.f32 %v1190, %v531
        %v1208 = vmul.f32 %v1204, %v1207
        %v1209 = vadd.f32 %v1051, %v1208
        %v1210 = vtanh.pop %v1209
        %v1211 = vsub.f32 1.0, %v1206
        %v1212 = vmul.f32 %v1211, %v1210
        %v1213 = vmul.f32 %v1206, %v1043
        %v1214 = vadd.f32 %v1212, %v1213
        %s1215 = scalar_lea.vmem %s233, 24 [#allocation7]
        %1216 = vst [vmem:[%s1215] sm:$0xff] %v1214
        %1217 = vst [vmem:[#allocation3] sm:$0xff] %v1214
        %s1218 = sand.u32 %s138, 1
        %s1219 = scalar_lea.sflag [#allocation6], %s1218
        %s1220 = sand.u32 %s138, 1
        %s1221 = smul.addr %s1220, 32
        %s1222 = scalar_lea.vmem [#allocation7], %s1221
        // Predicated region
        $region49: #{tpu_custom_call.1} parent=39 // pred_check
          %p1223 = pneg %p148
        $region50: #{tpu_custom_call.1} parent=39 // pred_check_branch
          %1225 = sbr.rel (%p1223) target = $region52
        $region51: #{tpu_custom_call.1} parent=39 // pred_region
          %s1226 = smul.u32 4, %s20
          %s1228 = ssub.s32 512, 512
          %1229 = vsyncadd %s1219, %s1228
          %s1230 = smul.addr %s1226, 128
          %s1231 = scalar_lea.hbm %s5, %s1230
          %s1232 = sshll.u32 %s1222, 4
          %s1233 = int_to_ptr.vmem [resolvable:$true] %s1232
          %1238 = dma.vmem_to_hbm [thread:$0]  %s1233, 512, %s1231, %s1219, 128, 128, 8
        $region52: #{tpu_custom_call.1} parent=39 // pred_fallthru
          _
      $region40: #{tpu_custom_call.1} parent=5 // pred_fallthru
        _
      %p1239 = scmp.le.s32.totalorder 2, %s15
      // Predicated region
      $region53: #{tpu_custom_call.1} parent=5 // pred_check
        %p1240 = pneg %p1239
      $region54: #{tpu_custom_call.1} parent=5 // pred_check_branch
        %1242 = sbr.rel (%p1240) target = $region56
      $region55: #{tpu_custom_call.1} parent=5 // pred_region
        %s1243 = ssub.s32 %s15, 2
        // Predicated region
        $region57: #{tpu_custom_call.1} parent=55 // pred_check
          %p1244 = pneg %p154
        $region58: #{tpu_custom_call.1} parent=55 // pred_check_branch
          %1246 = sbr.rel (%p1244) target = $region60
        $region59: #{tpu_custom_call.1} parent=55 // pred_region
          %s1247 = sand.u32 %s139, 1
          %s1248 = scalar_lea.sflag [#allocation6], %s1247
          %s1249 = sand.u32 %s139, 1
          %s1250 = smul.addr %s1249, 32
          %s1251 = scalar_lea.vmem [#allocation7], %s1250
          %1252 = dma.done %s1248, 512
        $region60: #{tpu_custom_call.1} parent=55 // pred_fallthru
          _
      $region56: #{tpu_custom_call.1} parent=5 // pred_fallthru
        _
    $region6: #{tpu_custom_call.1} parent=1 // loop_footer
      %s19 = sadd.s32 1, %s15
    $region7: #{tpu_custom_call.1} parent=1 // loop_footer_branch
      %14 = sbr.rel target = $region3
    $region8: #{tpu_custom_call.1} parent=1 // loop_exit
      _
    %1253 = vsyncpa [#allocation5], 1
    %s1254 = scalar_lea.sflag [#allocation5], 1
    %1255 = vsyncpa %s1254, 1
    %1256 = vsyncpa [#allocation6], 1
    %s1257 = scalar_lea.sflag [#allocation6], 1
    %1258 = vsyncpa %s1257, 1

</llo_original>
